<compile_context>
chip_gen: v5e
topology: v5e:2x2
jax: 0.10.0
libtpu: 0.0.40
codegen_flags: <defaults>
</compile_context>

<pallas_src>
import functools
import math

import jax
import jax.numpy as jnp
from jax.experimental import pallas as pl
from jax.experimental.pallas import tpu as pltpu


def _round_up(x, m):
    return ((x + m - 1) // m) * m


def _gelu(x):
    # tanh-approximate GELU (matches GPT-Neo's gelu_new); lowers to EUP tanh inside kernels.
    c = 0.7978845608028654
    return 0.5 * x * (1.0 + jnp.tanh(c * (x + 0.044715 * x * x * x)))


# ----------------------------------------------------------------------------
# Tiled matmul (+ optional fused bias / GELU epilogue) kernels
# ----------------------------------------------------------------------------

def _matmul_kernel(a_ref, b_ref, o_ref, acc_ref, *, activation):
    @pl.when(pl.program_id(2) == 0)
    def _():
        acc_ref[...] = jnp.zeros_like(acc_ref)

    acc_ref[...] += jnp.dot(a_ref[...].astype(jnp.bfloat16),
                            b_ref[...].astype(jnp.bfloat16),
                            preferred_element_type=jnp.float32)

    @pl.when(pl.program_id(2) == pl.num_programs(2) - 1)
    def _():
        out = acc_ref[...]
        if activation == "gelu":
            out = _gelu(out)
        o_ref[...] = out.astype(o_ref.dtype)


def _matmul_bias_kernel(a_ref, b_ref, bias_ref, o_ref, acc_ref, *, activation):
    @pl.when(pl.program_id(2) == 0)
    def _():
        acc_ref[...] = jnp.zeros_like(acc_ref)

    acc_ref[...] += jnp.dot(a_ref[...].astype(jnp.bfloat16),
                            b_ref[...].astype(jnp.bfloat16),
                            preferred_element_type=jnp.float32)

    @pl.when(pl.program_id(2) == pl.num_programs(2) - 1)
    def _():
        out = acc_ref[...] + bias_ref[...]
        if activation == "gelu":
            out = _gelu(out)
        o_ref[...] = out.astype(o_ref.dtype)


def _choose_tile(dim, pref, quantum):
    """Largest multiple of `quantum` (<= pref) dividing `dim`; else the padded default."""
    t = min(pref, _round_up(dim, quantum))
    t -= t % quantum
    t = max(t, quantum)
    cand = t
    while cand >= quantum:
        if dim % cand == 0:
            return cand
        cand -= quantum
    return t


def pallas_matmul(a, b, bias=None, *, activation=None, out_dtype=jnp.float32,
                  tm=256, tk=512, tn=256):
    """a @ b (+ bias, + optional fused GELU). bf16 MXU operands, f32 accumulation."""
    M, K = a.shape
    K2, N = b.shape
    assert K == K2

    # Small-shape fallback: pallas_call fixed overhead dwarfs the FLOPs here -> let XLA do it.
    if M < 128 or N < 128 or K < 128:
        y = jnp.dot(a.astype(jnp.float32), b.astype(jnp.float32))
        if bias is not None:
            y = y + bias
        if activation == "gelu":
            y = _gelu(y)
        return y.astype(out_dtype)

    # Prefer tiles that divide the real dims -> no pad/slice HBM copies on realistic configs.
    tm = _choose_tile(M, tm, 8)
    tk = _choose_tile(K, tk, 128)
    tn = _choose_tile(N, tn, 128)
    Mp, Kp, Np = _round_up(M, tm), _round_up(K, tk), _round_up(N, tn)

    a_p, b_p = a, b                     # no wrapper dtype casts: cast happens in-kernel
    if (Mp, Kp) != (M, K):
        a_p = jnp.pad(a_p, ((0, Mp - M), (0, Kp - K)))
    if (Kp, Np) != (K, N):
        b_p = jnp.pad(b_p, ((0, Kp - K), (0, Np - N)))

    in_specs = [
        pl.BlockSpec((tm, tk), lambda i, j, k: (i, k)),
        pl.BlockSpec((tk, tn), lambda i, j, k: (k, j)),
    ]
    operands = [a_p, b_p]
    if bias is not None:
        bias_p = bias.reshape(1, N).astype(jnp.float32)
        if Np != N:
            bias_p = jnp.pad(bias_p, ((0, 0), (0, Np - N)))
        in_specs.append(pl.BlockSpec((1, tn), lambda i, j, k: (0, j)))
        operands.append(bias_p)
        kernel = functools.partial(_matmul_bias_kernel, activation=activation)
    else:
        kernel = functools.partial(_matmul_kernel, activation=activation)

    out = pl.pallas_call(
        kernel,
        out_shape=jax.ShapeDtypeStruct((Mp, Np), out_dtype),
        grid=(Mp // tm, Np // tn, Kp // tk),
        in_specs=in_specs,
        out_specs=pl.BlockSpec((tm, tn), lambda i, j, k: (i, j)),
        scratch_shapes=[pltpu.VMEM((tm, tn), jnp.float32)],
        compiler_params=pltpu.CompilerParams(
            dimension_semantics=("parallel", "parallel", "arbitrary"),
            vmem_limit_bytes=32 * 1024 * 1024),
    )(*operands)

    if (Mp, Np) != (M, N):
        out = out[:M, :N]
    return out


def linear(x, w, b=None, activation=None, out_dtype=jnp.float32):
    shp = x.shape
    y = pallas_matmul(x.reshape(-1, shp[-1]), w, b,
                      activation=activation, out_dtype=out_dtype)
    return y.reshape(shp[:-1] + (w.shape[-1],))


# ----------------------------------------------------------------------------
# Flash-style causal attention kernel (head-tiled grid, causal block skip)
# ----------------------------------------------------------------------------

def _flash_attn_kernel(q_ref, k_ref, v_ref, o_ref, m_sc, l_sc, acc_sc,
                       *, seq_len, tq, tk, sm_scale):
    qi = pl.program_id(2)
    ki = pl.program_id(3)

    @pl.when(ki == 0)
    def _():
        m_sc[...] = jnp.full_like(m_sc, -jnp.inf)
        l_sc[...] = jnp.zeros_like(l_sc)
        acc_sc[...] = jnp.zeros_like(acc_sc)

    # Skip (q, k) blocks that lie entirely above the causal diagonal.
    @pl.when(ki * tk <= qi * tq + tq - 1)
    def _():
        q = q_ref[0].astype(jnp.bfloat16)   # (hb, tq, Dh)
        k = k_ref[0].astype(jnp.bfloat16)   # (hb, tk, Dh)
        v = v_ref[0].astype(jnp.bfloat16)   # (hb, tk, Dh)

        # Batched-over-heads QK^T, f32 scores; scale applied in-kernel on the VPU.
        s = jax.lax.dot_general(q, k, (((2,), (2,)), ((0,), (0,))),
                                preferred_element_type=jnp.float32)  # (hb, tq, tk)
        s = s * sm_scale

        row = qi * tq + jax.lax.broadcasted_iota(jnp.int32, (1, tq, tk), 1)
        col = ki * tk + jax.lax.broadcasted_iota(jnp.int32, (1, tq, tk), 2)
        mask = (col <= row) & (col < seq_len)      # causal + key-padding mask
        s = jnp.where(mask, s, jnp.float32(-1e30))

        m_prev = m_sc[...]
        m_new = jnp.maximum(m_prev, jnp.max(s, axis=-1, keepdims=True))
        alpha = jnp.exp(m_prev - m_new)
        p = jnp.exp(s - m_new)
        l_sc[...] = alpha * l_sc[...] + jnp.sum(p, axis=-1, keepdims=True)
        pv = jax.lax.dot_general(p.astype(v.dtype), v, (((2,), (1,)), ((0,), (0,))),
                                 preferred_element_type=jnp.float32)  # (hb, tq, Dh)
        acc_sc[...] = alpha * acc_sc[...] + pv
        m_sc[...] = m_new

    @pl.when(ki == pl.num_programs(3) - 1)
    def _():
        o_ref[0] = (acc_sc[...] *
                    pl.reciprocal(l_sc[...], approx=True)).astype(o_ref.dtype)


def _pick_head_block(H, tq, tk, Dh):
    """Largest divisor of H whose double-buffered blocks + scratch stay well under VMEM budget."""
    budget = 6 * 1024 * 1024
    hb = H
    while hb > 1:
        need = hb * (2 * (tq + 2 * tk) * Dh * 2      # double-buffered bf16 q/k/v blocks
                     + 2 * tq * Dh * 2                # double-buffered bf16 out block
                     + tq * Dh * 4 + 2 * tq * 4)      # f32 acc + m/l scratch
        if need <= budget:
            break
        nxt = hb - 1
        while nxt > 1 and H % nxt != 0:
            nxt -= 1
        hb = nxt
    return hb


def pallas_attention(q, k, v):
    """q, k, v: (B, H, S, Dh) (any float dtype; bf16 preferred) -> (B, H, S, Dh) bf16."""
    B, H, S, Dh = q.shape
    sm_scale = 1.0 / math.sqrt(Dh)

    tq = min(128, _round_up(S, 8))
    tk = min(128, _round_up(S, 8))
    Sp = _round_up(S, max(tq, tk))
    if Sp != S:
        pad = ((0, 0), (0, 0), (0, Sp - S), (0, 0))
        q = jnp.pad(q, pad)
        k = jnp.pad(k, pad)
        v = jnp.pad(v, pad)

    hb = _pick_head_block(H, tq, tk, Dh)

    q_spec = pl.BlockSpec((1, hb, tq, Dh), lambda b, h, qi, ki: (b, h, qi, 0))
    kv_spec = pl.BlockSpec((1, hb, tk, Dh), lambda b, h, qi, ki: (b, h, ki, 0))

    kernel = functools.partial(_flash_attn_kernel, seq_len=S, tq=tq, tk=tk,
                               sm_scale=sm_scale)
    o = pl.pallas_call(
        kernel,
        out_shape=jax.ShapeDtypeStruct((B, H, Sp, Dh), jnp.bfloat16),
        grid=(B, H // hb, Sp // tq, Sp // tk),
        in_specs=[q_spec, kv_spec, kv_spec],
        out_specs=q_spec,
        scratch_shapes=[pltpu.VMEM((hb, tq, 1), jnp.float32),
                        pltpu.VMEM((hb, tq, 1), jnp.float32),
                        pltpu.VMEM((hb, tq, Dh), jnp.float32)],
        compiler_params=pltpu.CompilerParams(
            dimension_semantics=("parallel", "parallel", "parallel", "arbitrary"),
            vmem_limit_bytes=32 * 1024 * 1024),
    )(q, k, v)

    if Sp != S:
        o = o[:, :, :S, :]
    return o


# ----------------------------------------------------------------------------
# Mamba selective scan kernel (chunked sequence axis, channel-parallel axis)
# ----------------------------------------------------------------------------

def _scan_kernel(u_ref, dt_ref, bT_ref, c_ref, at_ref, d_ref, y_ref,
                 h_ref, u_sc, dt_sc, y_sc, *, ts):
    # u, dt, y : (1, ts, ci) bf16     bT : (1, d_state, ts) f32   c : (1, ts, d_state) f32
    # at       : (d_state, ci) f32    d  : (1, ci) f32
    # h scratch: (d_state, ci) f32, carried across the chunk ("arbitrary") grid axis
    @pl.when(pl.program_id(2) == 0)
    def _():
        h_ref[...] = jnp.zeros_like(h_ref)

    # Stage the bf16 chunk once into f32 VMEM scratch: HBM traffic stays bf16, the
    # per-timestep dynamic row reads below operate on plain f32 tiles.
    u_sc[...] = u_ref[0].astype(jnp.float32)
    dt_sc[...] = dt_ref[0].astype(jnp.float32)

    A_t = at_ref[...]        # hoisted: loaded once per chunk, not per timestep
    D_row = d_ref[...]       # (1, ci)

    def step(t, carry):
        dt_row = dt_sc[pl.ds(t, 1), :]          # (1, ci)  lane-dense row
        u_row = u_sc[pl.ds(t, 1), :]            # (1, ci)
        b_col = bT_ref[0, :, pl.ds(t, 1)]       # (d_state, 1)
        c_row = c_ref[0, pl.ds(t, 1), :]        # (1, d_state)
        dA = jnp.exp(dt_row * A_t)              # (d_state, ci)
        h_new = dA * h_ref[...] + b_col * (dt_row * u_row)
        h_ref[...] = h_new
        y_row = jnp.dot(c_row, h_new,
                        preferred_element_type=jnp.float32) + D_row * u_row
        y_sc[pl.ds(t, 1), :] = y_row
        return carry

    jax.lax.fori_loop(0, ts, step, 0, unroll=min(8, ts))
    y_ref[0] = y_sc[...].astype(y_ref.dtype)    # one lane-dense bf16 block store per chunk


def pallas_selective_scan(u, delta, A, Bm, Cm, D):
    """Mamba selective scan. u, delta: (B,S,d_inner); Bm, Cm: (B,S,d_state); A: (d_inner,d_state)."""
    Bsz, S, d_inner = u.shape
    d_state = A.shape[-1]

    # Sequence chunking (bounds VMEM at real S) and channel blocking (parallel axis).
    ts = S
    for cand in (256, 128, 64, 32, 16, 8):
        if S > cand and S % cand == 0:
            ts = cand
            break
    ci = d_inner
    for cand in (1024, 512, 256, 128):
        if d_inner > cand and d_inner % cand == 0:
            ci = cand
            break

    BmT = jnp.transpose(Bm, (0, 2, 1)).astype(jnp.float32)   # (B, d_state, S) - tiny tensor
    A_t = jnp.transpose(A).astype(jnp.float32)               # (d_state, d_inner)
    D_row = D.reshape(1, d_inner).astype(jnp.float32)

    # Big streams in bf16 (half the HBM traffic of the mem-bound scan); casts fuse into
    # the producing XLA elementwise ops (silu / softplus).
    u_b = u.astype(jnp.bfloat16)
    dt_b = delta.astype(jnp.bfloat16)

    kernel = functools.partial(_scan_kernel, ts=ts)
    y = pl.pallas_call(
        kernel,
        out_shape=jax.ShapeDtypeStruct((Bsz, S, d_inner), jnp.bfloat16),
        grid=(Bsz, d_inner // ci, S // ts),
        in_specs=[
            pl.BlockSpec((1, ts, ci), lambda b, c, s: (b, s, c)),        # u
            pl.BlockSpec((1, ts, ci), lambda b, c, s: (b, s, c)),        # delta
            pl.BlockSpec((1, d_state, ts), lambda b, c, s: (b, 0, s)),   # B^T
            pl.BlockSpec((1, ts, d_state), lambda b, c, s: (b, s, 0)),   # C
            pl.BlockSpec((d_state, ci), lambda b, c, s: (0, c)),         # A^T
            pl.BlockSpec((1, ci), lambda b, c, s: (0, c)),               # D
        ],
        out_specs=pl.BlockSpec((1, ts, ci), lambda b, c, s: (b, s, c)),
        scratch_shapes=[pltpu.VMEM((d_state, ci), jnp.float32),          # h (carried)
                        pltpu.VMEM((ts, ci), jnp.float32),               # u chunk (f32)
                        pltpu.VMEM((ts, ci), jnp.float32),               # dt chunk (f32)
                        pltpu.VMEM((ts, ci), jnp.float32)],              # y chunk (f32)
        compiler_params=pltpu.CompilerParams(
            dimension_semantics=("parallel", "parallel", "arbitrary"),
            vmem_limit_bytes=32 * 1024 * 1024),
    )(u_b, dt_b, BmT, Cm.astype(jnp.float32), A_t, D_row)
    return y


# ----------------------------------------------------------------------------
# Plain-JAX glue (norms, conv1d, embeddings)
# ----------------------------------------------------------------------------

def layer_norm(x, g, b, eps=1e-5):
    mu = jnp.mean(x, axis=-1, keepdims=True)
    var = jnp.mean((x - mu) ** 2, axis=-1, keepdims=True)
    return (x - mu) * jax.lax.rsqrt(var + eps) * g + b


def rms_norm(x, g, eps=1e-5):
    var = jnp.mean(x * x, axis=-1, keepdims=True)
    return x * jax.lax.rsqrt(var + eps) * g


def causal_depthwise_conv1d(x, w, b):
    # x: (B, S, C), w: (C, K), b: (C,); causal depthwise conv along seq.
    Bsz, S, C = x.shape
    K = w.shape[-1]
    x_pad = jnp.pad(x, ((0, 0), (K - 1, 0), (0, 0)))
    acc = jnp.zeros_like(x)
    for k in range(K):
        acc = acc + x_pad[:, k:k + S, :] * w[:, k]
    return acc + b


# ----------------------------------------------------------------------------
# Layers
# ----------------------------------------------------------------------------

def transformer_layer(x, p, n_heads):
    B, S, D = x.shape
    Dh = D // n_heads
    h = layer_norm(x, p["ln1_g"], p["ln1_b"])

    # Fused QKV projection; bf16 output feeds the attention kernel directly.
    qkv = linear(h, p["w_qkv"], p["b_qkv"], out_dtype=jnp.bfloat16)
    q, k, v = jnp.split(qkv, 3, axis=-1)

    # TODO(synk): the (B,S,H,Dh)<->(B,H,S,Dh) head transposes remain XLA-side copies (bf16,
    # half-traffic); mapping heads purely via BlockSpec lane offsets needs Dh-wide blocks that
    # violate the (8,128) lane rule for Dh < 128.
    def split_heads(t):
        return jnp.transpose(t.reshape(B, S, n_heads, Dh), (0, 2, 1, 3))

    attn = pallas_attention(split_heads(q), split_heads(k), split_heads(v))
    attn = jnp.transpose(attn, (0, 2, 1, 3)).reshape(B, S, D)
    x = x + linear(attn, p["wo"], p["bo"])

    h = layer_norm(x, p["ln2_g"], p["ln2_b"])
    # bias + GELU fused into the matmul epilogue; bf16 intermediate activation.
    h = linear(h, p["w_fc"], p["b_fc"], activation="gelu", out_dtype=jnp.bfloat16)
    x = x + linear(h, p["w_proj"], p["b_proj"])
    return x


def mamba_layer(x, p):
    B, S, D = x.shape
    residual = x
    h = rms_norm(x, p["norm_g"])

    xz = linear(h, p["w_in"])                    # (B, S, 2*d_inner), no bias
    d_inner = xz.shape[-1] // 2
    x_part, z = xz[..., :d_inner], xz[..., d_inner:]

    x_part = causal_depthwise_conv1d(x_part, p["conv_w"], p["conv_b"])
    x_part = jax.nn.silu(x_part)

    xp = linear(x_part, p["w_x"])                # (B, S, dt_rank + 2*d_state)
    dt_rank = p["w_dt"].shape[0]
    d_state = p["A_log"].shape[-1]
    dt, Bm, Cm = (xp[..., :dt_rank],
                  xp[..., dt_rank:dt_rank + d_state],
                  xp[..., dt_rank + d_state:])
    delta = jax.nn.softplus(linear(dt, p["w_dt"], p["b_dt"]))   # (B, S, d_inner)

    A = -jnp.exp(p["A_log"])
    y = pallas_selective_scan(x_part, delta, A, Bm, Cm, p["D"])
    y = y.astype(jnp.float32) * jax.nn.silu(z)
    out = linear(y, p["w_out"])
    return residual + out


def null_splitter(x):
    return x, x


def null_combiner(t, m):
    # TODO(synk): Null/Residual projector class definitions are not given in the reference;
    # using identity split + mean combine as the 'null' projector.
    return 0.5 * (t + m)


# ----------------------------------------------------------------------------
# HybridModel forward
# ----------------------------------------------------------------------------

def hybrid_forward(params, input_ids, cfg):
    B, S = input_ids.shape
    wte, wpe = params["wte"], params["wpe"]
    trans_t_emb = jnp.take(wte, input_ids, axis=0)                    # (B, S, D)
    trans_p_emb = jnp.take(wpe, jnp.arange(S), axis=0)[None, :, :]    # (1, S, D)
    combined_emb = trans_t_emb + trans_p_emb

    hidden_states = [combined_emb]
    tl_per_block = cfg["n_trans_layers"] // cfg["n_blocks"]
    ml_per_block = cfg["n_mamba_layers"] // cfg["n_blocks"]

    for i in range(cfg["n_blocks"]):
        trans_emb, mamba_emb = null_splitter(combined_emb)
        for j in range(tl_per_block):
            trans_emb = transformer_layer(trans_emb,
                                          params["trans_layers"][tl_per_block * i + j],
                                          cfg["n_heads"])
        for k in range(ml_per_block):
            mamba_emb = mamba_layer(mamba_emb,
                                    params["mamba_layers"][ml_per_block * i + k])
        combined_emb = null_combiner(trans_emb, mamba_emb)
        hidden_states.append(combined_emb)

    # lm_head tied to wte (same values), pre-transposed + bf16 at init (no per-call transpose/cast).
    logits = linear(combined_emb, params["wte_t"])
    return hidden_states, logits


# ----------------------------------------------------------------------------
# Deterministic parameter init (matmul weights stored bf16, everything else f32)
# ----------------------------------------------------------------------------

def init_params(key, cfg):
    d = cfg["d_model"]
    d_inner = cfg["d_inner"]
    d_state = cfg["d_state"]
    dt_rank = cfg["dt_rank"]
    d_conv = cfg["d_conv"]
    vocab = cfg["vocab"]
    scale = 0.02

    def nrm(key, shape):
        return scale * jax.random.normal(key, shape, jnp.float32)

    def bf16(x):
        return x.astype(jnp.bfloat16)

    keys = jax.random.split(key, 4 + cfg["n_trans_layers"] + cfg["n_mamba_layers"])
    wte = nrm(keys[0], (vocab, d))
    params = {
        "wte": wte,
        "wte_t": bf16(wte.T),    # tied lm_head weight, pre-transposed, bf16
        "wpe": nrm(keys[1], (cfg["max_pos"], d)),
        "trans_layers": [],
        "mamba_layers": [],
    }

    for li in range(cfg["n_trans_layers"]):
        ks = jax.random.split(keys[2 + li], 8)
        wq, wk, wv = nrm(ks[0], (d, d)), nrm(ks[1], (d, d)), nrm(ks[2], (d, d))
        params["trans_layers"].append({
            "ln1_g": jnp.ones((d,), jnp.float32), "ln1_b": jnp.zeros((d,), jnp.float32),
            "w_qkv": bf16(jnp.concatenate([wq, wk, wv], axis=-1)),   # fused QKV weight
            "b_qkv": jnp.zeros((3 * d,), jnp.float32),
            "wo": bf16(nrm(ks[3], (d, d))), "bo": jnp.zeros((d,), jnp.float32),
            "ln2_g": jnp.ones((d,), jnp.float32), "ln2_b": jnp.zeros((d,), jnp.float32),
            "w_fc": bf16(nrm(ks[4], (d, 4 * d))), "b_fc": jnp.zeros((4 * d,), jnp.float32),
            "w_proj": bf16(nrm(ks[5], (4 * d, d))), "b_proj": jnp.zeros((d,), jnp.float32),
        })

    for li in range(cfg["n_mamba_layers"]):
        ks = jax.random.split(keys[2 + cfg["n_trans_layers"] + li], 8)
        A_log = jnp.log(jnp.broadcast_to(jnp.arange(1, d_state + 1, dtype=jnp.float32),
                                         (d_inner, d_state)))
        params["mamba_layers"].append({
            "norm_g": jnp.ones((d,), jnp.float32),
            "w_in": bf16(nrm(ks[0], (d, 2 * d_inner))),
            "conv_w": nrm(ks[1], (d_inner, d_conv)),
            "conv_b": jnp.zeros((d_inner,), jnp.float32),
            "w_x": bf16(nrm(ks[2], (d_inner, dt_rank + 2 * d_state))),
            "w_dt": bf16(nrm(ks[3], (dt_rank, d_inner))),
            "b_dt": jnp.zeros((d_inner,), jnp.float32),
            "A_log": A_log,
            "D": jnp.ones((d_inner,), jnp.float32),
            "w_out": bf16(nrm(ks[4], (d_inner, d))),
        })

    return params


# ----------------------------------------------------------------------------
# Small pure-JAX references for kernel self-checks
# ----------------------------------------------------------------------------

def attention_reference(q, k, v):
    B, H, S, Dh = q.shape
    s = jnp.einsum("bhqd,bhkd->bhqk", q.astype(jnp.float32),
                   k.astype(jnp.float32)) / math.sqrt(Dh)
    mask = jnp.tril(jnp.ones((S, S), dtype=bool))
    s = jnp.where(mask[None, None], s, -1e30)
    p = jax.nn.softmax(s, axis=-1)
    return jnp.einsum("bhqk,bhkd->bhqd", p, v.astype(jnp.float32))


def selective_scan_reference(u, delta, A, Bm, Cm, D):
    def scan_one(u_b, dt_b, B_b, C_b):
        def step(h, xs):
            u_t, dt_t, b_t, c_t = xs
            dA = jnp.exp(dt_t[:, None] * A)                       # (d_inner, d_state)
            h = dA * h + (dt_t * u_t)[:, None] * b_t[None, :]
            y = h @ c_t + D * u_t
            return h, y
        h0 = jnp.zeros((u_b.shape[-1], A.shape[-1]), jnp.float32)
        _, ys = jax.lax.scan(step, h0, (u_b, dt_b, B_b, C_b))
        return ys
    return jax.vmap(scan_one)(u, delta, Bm, Cm)


# ----------------------------------------------------------------------------
# Main
# ----------------------------------------------------------------------------

if __name__ == "__main__":
    # ---- Kernel self-checks (aligned shapes exercise the Pallas matmul path too) ----
    tk1, tk2, tk3, tk4, tk5, tk6 = jax.random.split(jax.random.PRNGKey(123), 6)

    a_t = jax.random.normal(tk1, (256, 512), jnp.float32).astype(jnp.bfloat16)
    b_t = jax.random.normal(tk2, (512, 256), jnp.float32).astype(jnp.bfloat16)
    bias_t = jax.random.normal(tk3, (256,), jnp.float32)
    got_mm = pallas_matmul(a_t, b_t, bias_t, activation="gelu")
    want_mm = _gelu(a_t.astype(jnp.float32) @ b_t.astype(jnp.float32) + bias_t)
    jax.block_until_ready(got_mm)
    assert jnp.allclose(got_mm, want_mm, atol=0.5, rtol=0.05), "matmul kernel mismatch"

    qh = jax.random.normal(tk4, (2, 4, 8, 8), jnp.float32).astype(jnp.bfloat16)
    kh = jax.random.normal(tk5, (2, 4, 8, 8), jnp.float32).astype(jnp.bfloat16)
    vh = jax.random.normal(tk6, (2, 4, 8, 8), jnp.float32).astype(jnp.bfloat16)
    got_at = pallas_attention(qh, kh, vh).astype(jnp.float32)
    want_at = attention_reference(qh, kh, vh)
    jax.block_until_ready(got_at)
    assert jnp.allclose(got_at, want_at, atol=3e-2, rtol=3e-2), "attention kernel mismatch"

    sk = jax.random.split(jax.random.PRNGKey(321), 6)
    u_t = jax.random.normal(sk[0], (2, 8, 64), jnp.float32)
    dt_t = jax.nn.softplus(jax.random.normal(sk[1], (2, 8, 64), jnp.float32))
    Bm_t = jax.random.normal(sk[2], (2, 8, 16), jnp.float32)
    Cm_t = jax.random.normal(sk[3], (2, 8, 16), jnp.float32)
    A_m = -jnp.exp(0.5 * jax.random.normal(sk[4], (64, 16), jnp.float32))
    D_m = jax.random.normal(sk[5], (64,), jnp.float32)
    got_sc = pallas_selective_scan(u_t, dt_t, A_m, Bm_t, Cm_t, D_m).astype(jnp.float32)
    u_q = u_t.astype(jnp.bfloat16).astype(jnp.float32)
    dt_q = dt_t.astype(jnp.bfloat16).astype(jnp.float32)
    want_sc = selective_scan_reference(u_q, dt_q, A_m, Bm_t, Cm_t, D_m)
    jax.block_until_ready(got_sc)
    assert jnp.allclose(got_sc, want_sc, atol=5e-2, rtol=5e-2), "selective scan kernel mismatch"

    # ---- HybridModel forward at toy shapes ----
    cfg = dict(
        vocab=64,
        d_model=32,          # dim1 == dim2 -> 'null' projector
        max_pos=16,
        n_blocks=2,          # small analogue of the 12-block model
        n_trans_layers=2,    # 1 transformer layer per block
        n_mamba_layers=4,    # 2 mamba layers per block
        n_heads=4,
        d_inner=64,
        d_state=16,
        dt_rank=4,
        d_conv=4,
    )
    assert cfg["n_trans_layers"] % cfg["n_blocks"] == 0
    assert cfg["n_mamba_layers"] % cfg["n_blocks"] == 0

    key = jax.random.PRNGKey(0)
    pkey, dkey = jax.random.split(key)
    params = init_params(pkey, cfg)

    batch, seq = 2, 8
    input_ids = jax.random.randint(dkey, (batch, seq), 0, cfg["vocab"], dtype=jnp.int32)

    fwd = jax.jit(functools.partial(hybrid_forward, cfg=cfg))
    hidden_states, logits = fwd(params, input_ids)
    jax.block_until_ready(logits)
    jax.block_until_ready(hidden_states[-1])

    assert logits.shape == (batch, seq, cfg["vocab"])
    assert len(hidden_states) == cfg["n_blocks"] + 1
    assert all(h.shape == (batch, seq, cfg["d_model"]) for h in hidden_states)
    assert bool(jnp.all(jnp.isfinite(logits)))
    print("KERNEL_OK")
</pallas_src>

<mosaic_0001>
module attributes {stable_mosaic.version = 11 : i64} {
  func.func @_matmul_bias_kernel(%arg0: i32, %arg1: i32, %arg2: i32, %arg3: memref<256x512xbf16, #tpu.memory_space<vmem>>, %arg4: memref<512x256xbf16, #tpu.memory_space<vmem>>, %arg5: memref<1x256xf32, #tpu.memory_space<vmem>>, %arg6: memref<256x256xf32, #tpu.memory_space<vmem>>, %arg7: memref<256x256xf32, #tpu.memory_space<vmem>>) attributes {dimension_semantics = [#tpu.dimension_semantics<parallel>, #tpu.dimension_semantics<parallel>, #tpu.dimension_semantics<arbitrary>], iteration_bounds = array<i64: 1, 1, 1>, scalar_prefetch = 0 : i64, scratch_operands = 1 : i64, tpu.core_type = #tpu.core_type<tc>, window_params = [{transform_indices = @transform_0, window_bounds = array<i64: 256, 512>}, {transform_indices = @transform_1, window_bounds = array<i64: 512, 256>}, {transform_indices = @transform_2, window_bounds = array<i64: 1, 256>}, {transform_indices = @transform_3, window_bounds = array<i64: 256, 256>}]} {
    %c0_i32 = arith.constant 0 : i32
    %0 = arith.cmpi eq, %arg2, %c0_i32 : i32
    %1 = arith.extui %0 : i1 to i32
    %c0_i32_0 = arith.constant 0 : i32
    %2 = arith.cmpi ne, %1, %c0_i32_0 : i32
    scf.if %2 {
      %cst_10 = arith.constant 0.000000e+00 : f32
      %12 = vector.broadcast %cst_10 : f32 to vector<256x256xf32>
      %c0_11 = arith.constant 0 : index
      %c0_12 = arith.constant 0 : index
      %13 = vector.load %arg7[%c0_11, %c0_12] : memref<256x256xf32, #tpu.memory_space<vmem>>, vector<256x256xf32>
      tpu.vector_store %arg7[%c0_11, %c0_12], %12 {strides = array<i32>} : memref<256x256xf32, #tpu.memory_space<vmem>>, vector<256x256xf32>,
    } else {
    }
    %c0 = arith.constant 0 : index
    %c0_1 = arith.constant 0 : index
    %3 = vector.load %arg7[%c0, %c0_1] : memref<256x256xf32, #tpu.memory_space<vmem>>, vector<256x256xf32>
    %c0_2 = arith.constant 0 : index
    %c0_3 = arith.constant 0 : index
    %4 = vector.load %arg3[%c0_2, %c0_3] : memref<256x512xbf16, #tpu.memory_space<vmem>>, vector<256x512xbf16>
    %c0_4 = arith.constant 0 : index
    %c0_5 = arith.constant 0 : index
    %5 = vector.load %arg4[%c0_4, %c0_5] : memref<512x256xbf16, #tpu.memory_space<vmem>>, vector<512x256xbf16>
    %cst = arith.constant dense<0.000000e+00> : vector<256x256xf32>
    %6 = tpu.matmul %4, %5, %cst {dimension_numbers = #tpu.dot_dimension_numbers<[1], [0], [0], [1], [0, 0, 1, 1], [], []>} : vector<256x512xbf16>, vector<512x256xbf16>, vector<256x256xf32> -> vector<256x256xf32>
    %7 = arith.addf %3, %6 : vector<256x256xf32>
    %c0_6 = arith.constant 0 : index
    %c0_7 = arith.constant 0 : index
    %8 = vector.load %arg7[%c0_6, %c0_7] : memref<256x256xf32, #tpu.memory_space<vmem>>, vector<256x256xf32>
    tpu.vector_store %arg7[%c0_6, %c0_7], %7 {strides = array<i32>} : memref<256x256xf32, #tpu.memory_space<vmem>>, vector<256x256xf32>,
    %c0_i32_8 = arith.constant 0 : i32
    %9 = arith.cmpi eq, %arg2, %c0_i32_8 : i32
    %10 = arith.extui %9 : i1 to i32
    %c0_i32_9 = arith.constant 0 : i32
    %11 = arith.cmpi ne, %10, %c0_i32_9 : i32
    scf.if %11 {
      %c0_10 = arith.constant 0 : index
      %c0_11 = arith.constant 0 : index
      %12 = vector.load %arg7[%c0_10, %c0_11] : memref<256x256xf32, #tpu.memory_space<vmem>>, vector<256x256xf32>
      %c0_12 = arith.constant 0 : index
      %c0_13 = arith.constant 0 : index
      %13 = vector.load %arg5[%c0_12, %c0_13] : memref<1x256xf32, #tpu.memory_space<vmem>>, vector<1x256xf32>
      %14 = vector.broadcast %13 : vector<1x256xf32> to vector<256x256xf32>
      %15 = arith.addf %12, %14 : vector<256x256xf32>
      %cst_14 = arith.constant 5.000000e-01 : f32
      %16 = vector.broadcast %cst_14 : f32 to vector<256x256xf32>
      %17 = arith.mulf %16, %15 : vector<256x256xf32>
      %cst_15 = arith.constant 4.471500e-02 : f32
      %18 = vector.broadcast %cst_15 : f32 to vector<256x256xf32>
      %19 = arith.mulf %18, %15 : vector<256x256xf32>
      %20 = arith.mulf %19, %15 : vector<256x256xf32>
      %21 = arith.mulf %20, %15 : vector<256x256xf32>
      %22 = arith.addf %15, %21 : vector<256x256xf32>
      %cst_16 = arith.constant 0.797884583 : f32
      %23 = vector.broadcast %cst_16 : f32 to vector<256x256xf32>
      %24 = arith.mulf %23, %22 : vector<256x256xf32>
      %25 = math.tanh %24 : vector<256x256xf32>
      %cst_17 = arith.constant 1.000000e+00 : f32
      %26 = vector.broadcast %cst_17 : f32 to vector<256x256xf32>
      %27 = arith.addf %26, %25 : vector<256x256xf32>
      %28 = arith.mulf %17, %27 : vector<256x256xf32>
      %c0_18 = arith.constant 0 : index
      %c0_19 = arith.constant 0 : index
      %29 = vector.load %arg6[%c0_18, %c0_19] : memref<256x256xf32, #tpu.memory_space<vmem>>, vector<256x256xf32>
      tpu.vector_store %arg6[%c0_18, %c0_19], %28 {strides = array<i32>} : memref<256x256xf32, #tpu.memory_space<vmem>>, vector<256x256xf32>,
    } else {
    }
    return
  }
  func.func @transform_0(%arg0: i32, %arg1: i32, %arg2: i32) -> (i32, i32) {
    %c0_i32 = arith.constant 0 : i32
    return %arg0, %arg2 : i32, i32
  }
  func.func @transform_1(%arg0: i32, %arg1: i32, %arg2: i32) -> (i32, i32) {
    %c0_i32 = arith.constant 0 : i32
    return %arg2, %arg1 : i32, i32
  }
  func.func @transform_2(%arg0: i32, %arg1: i32, %arg2: i32) -> (i32, i32) {
    %c0_i32 = arith.constant 0 : i32
    %c0_i32_0 = arith.constant 0 : i32
    return %c0_i32, %arg1 : i32, i32
  }
  func.func @transform_3(%arg0: i32, %arg1: i32, %arg2: i32) -> (i32, i32) {
    %c0_i32 = arith.constant 0 : i32
    return %arg0, %arg1 : i32, i32
  }
}

</mosaic_0001>

<llo_original>
// kernel: tpu_custom_call.1
$region0: #{tpu_custom_call.1}
  #allocation0 [shape = 'u32[]', space=smem, size = 0x4, offset = 0x4, fixed_abs, tag = 'smem constant byte address 0x4 - core index']
  #allocation1 [shape = 'u32[72,128]{1,0:T(1,128)}', space=vmem, size = 0x9000, scoped, tag = 'internal scratch']
  #allocation2 [shape = 'f32[256,256]{1,0:T(8,128)}', space=vmem, size = 0x40000, scoped, tag = 'scratch operand']
  %s0 = inlined_call_operand.hbm [shape: bf16[256,512], index: 0, kind: input, shape index: {}]
  %s1 = inlined_call_operand.hbm [shape: bf16[512,256], index: 1, kind: input, shape index: {}]
  %s2 = inlined_call_operand.hbm [shape: f32[1,256], index: 2, kind: input, shape index: {}]
  %s3 = inlined_call_operand.hbm [shape: f32[256,256], index: 3, kind: output, shape index: {}]
  %s4 = sld [smem:[#allocation0]]
  $region42: #{tpu_custom_call.1} parent=0
    _
  %s6 = ssub.s32 1, %s4
  %s7 = scalar_select 0, %s6, %s4
  $region1: #{tpu_custom_call.1} parent=0
    #allocation3 [shape = 'u8[262144]{0}', space=vmem, size = 0x40000, scoped, tag = 'input window, operand 0, single buffered']
    #allocation4 [shape = 's32[1]{0}', space=sflag, size = 0x4, scoped, tag = 'scoped memory for tpu_custom_call.1']
    #allocation5 [shape = 's32[1]{0}', space=sflag, size = 0x4, scoped, tag = 'scoped memory for tpu_custom_call.1']
    #allocation6 [shape = 'u8[262144]{0}', space=vmem, size = 0x40000, scoped, tag = 'input window, operand 1, single buffered']
    #allocation7 [shape = 's32[1]{0}', space=sflag, size = 0x4, scoped, tag = 'scoped memory for tpu_custom_call.1']
    #allocation8 [shape = 'u8[1024]{0}', space=vmem, size = 0x400, scoped, tag = 'input window, operand 2, single buffered']
    #allocation9 [shape = 'u8[262144]{0}', space=vmem, size = 0x40000, scoped, tag = 'output window, operand 0, single buffered']
    %8 = vsyncpa [#allocation4], 0
    %9 = vsyncpa [#allocation7], 0
    %10 = vsyncpa [#allocation5], 0
    // Predicated region
    $region2: #{tpu_custom_call.1} parent=1 // pred_check
      _
    $region3: #{tpu_custom_call.1} parent=1 // pred_check_branch
      %12 = sbr.rel (0) target = $region5
    $region4: #{tpu_custom_call.1} parent=1 // pred_region
      %14 = vsyncadd [#allocation4], 0
      %s15 = sshll.u32 %s0, 4
      %s16 = int_to_ptr.hbm [resolvable:$true] %s15
      %s17 = sshll.u32 [#allocation3], 4
      %s18 = int_to_ptr.vmem [resolvable:$true] %s17
      %23 = dma.hbm_to_vmem [thread:$0]  %s16, 8192, %s18, [#allocation4], 256, 256, 16
    $region5: #{tpu_custom_call.1} parent=1 // pred_fallthru
      _
    // Predicated region
    $region6: #{tpu_custom_call.1} parent=1 // pred_check
      _
    $region7: #{tpu_custom_call.1} parent=1 // pred_check_branch
      %25 = sbr.rel (0) target = $region9
    $region8: #{tpu_custom_call.1} parent=1 // pred_region
      %27 = vsyncadd [#allocation7], 0
      %s28 = sshll.u32 %s1, 4
      %s29 = int_to_ptr.hbm [resolvable:$true] %s28
      %s30 = sshll.u32 [#allocation6], 4
      %s31 = int_to_ptr.vmem [resolvable:$true] %s30
      %36 = dma.hbm_to_vmem [thread:$0]  %s29, 8192, %s31, [#allocation7], 128, 128, 8
    $region9: #{tpu_custom_call.1} parent=1 // pred_fallthru
      _
    // Predicated region
    $region10: #{tpu_custom_call.1} parent=1 // pred_check
      _
    $region11: #{tpu_custom_call.1} parent=1 // pred_check_branch
      %38 = sbr.rel (0) target = $region13
    $region12: #{tpu_custom_call.1} parent=1 // pred_region
      %40 = vsyncadd [#allocation7], 0
      %s42 = sshll.u32 %s2, 4
      %s43 = int_to_ptr.hbm [resolvable:$true] %s42
      %s44 = sshll.u32 [#allocation8], 4
      %s45 = int_to_ptr.vmem [resolvable:$true] %s44
      %47 = dma.hbm_to_vmem [thread:$0]  %s43, 32, %s45, [#allocation7]
    $region13: #{tpu_custom_call.1} parent=1 // pred_fallthru
      _
    // Predicated region
    $region14: #{tpu_custom_call.1} parent=1 // pred_check
      _
    $region15: #{tpu_custom_call.1} parent=1 // pred_check_branch
      %49 = sbr.rel (0) target = $region17
    $region16: #{tpu_custom_call.1} parent=1 // pred_region
      %51 = dma.done [#allocation4], 8192
    $region17: #{tpu_custom_call.1} parent=1 // pred_fallthru
      _
    // Predicated region
    $region18: #{tpu_custom_call.1} parent=1 // pred_check
      _
    $region19: #{tpu_custom_call.1} parent=1 // pred_check_branch
      %53 = sbr.rel (0) target = $region21
    $region20: #{tpu_custom_call.1} parent=1 // pred_region
      %55 = dma.done [#allocation7], 8192
    $region21: #{tpu_custom_call.1} parent=1 // pred_fallthru
      _
    // Predicated region
    $region22: #{tpu_custom_call.1} parent=1 // pred_check
      _
    $region23: #{tpu_custom_call.1} parent=1 // pred_check_branch
      %57 = sbr.rel (0) target = $region25
    $region24: #{tpu_custom_call.1} parent=1 // pred_region
      %59 = dma.done [#allocation7], 32
    $region25: #{tpu_custom_call.1} parent=1 // pred_fallthru
      _
    %p60 = scmp.eq.s32.totalorder 0, 0
    // Predicated region
    $region26: #{tpu_custom_call.1} parent=1 // pred_check
      %p61 = pneg %p60
    $region27: #{tpu_custom_call.1} parent=1 // pred_check_branch
      %63 = sbr.rel (%p61) target = $region29
    $region28: #{tpu_custom_call.1} parent=1 // pred_region
      %64 = vst [vmem:[#allocation2] sm:$0xff] 0.0
      %65 = vst [vmem:[#allocation2 + $0x8] sm:$0xff] 0.0
      %66 = vst [vmem:[#allocation2 + $0x10] sm:$0xff] 0.0
      %67 = vst [vmem:[#allocation2 + $0x18] sm:$0xff] 0.0
      %68 = vst [vmem:[#allocation2 + $0x20] sm:$0xff] 0.0
      %69 = vst [vmem:[#allocation2 + $0x28] sm:$0xff] 0.0
      %70 = vst [vmem:[#allocation2 + $0x30] sm:$0xff] 0.0
      %71 = vst [vmem:[#allocation2 + $0x38] sm:$0xff] 0.0
      %72 = vst [vmem:[#allocation2 + $0x40] sm:$0xff] 0.0
      %73 = vst [vmem:[#allocation2 + $0x48] sm:$0xff] 0.0
      %74 = vst [vmem:[#allocation2 + $0x50] sm:$0xff] 0.0
      %75 = vst [vmem:[#allocation2 + $0x58] sm:$0xff] 0.0
      %76 = vst [vmem:[#allocation2 + $0x60] sm:$0xff] 0.0
      %77 = vst [vmem:[#allocation2 + $0x68] sm:$0xff] 0.0
      %78 = vst [vmem:[#allocation2 + $0x70] sm:$0xff] 0.0
      %79 = vst [vmem:[#allocation2 + $0x78] sm:$0xff] 0.0
      %80 = vst [vmem:[#allocation2 + $0x80] sm:$0xff] 0.0
      %81 = vst [vmem:[#allocation2 + $0x88] sm:$0xff] 0.0
      %82 = vst [vmem:[#allocation2 + $0x90] sm:$0xff] 0.0
      %83 = vst [vmem:[#allocation2 + $0x98] sm:$0xff] 0.0
      %84 = vst [vmem:[#allocation2 + $0xa0] sm:$0xff] 0.0
      %85 = vst [vmem:[#allocation2 + $0xa8] sm:$0xff] 0.0
      %86 = vst [vmem:[#allocation2 + $0xb0] sm:$0xff] 0.0
      %87 = vst [vmem:[#allocation2 + $0xb8] sm:$0xff] 0.0
      %88 = vst [vmem:[#allocation2 + $0xc0] sm:$0xff] 0.0
      %89 = vst [vmem:[#allocation2 + $0xc8] sm:$0xff] 0.0
      %90 = vst [vmem:[#allocation2 + $0xd0] sm:$0xff] 0.0
      %91 = vst [vmem:[#allocation2 + $0xd8] sm:$0xff] 0.0
      %92 = vst [vmem:[#allocation2 + $0xe0] sm:$0xff] 0.0
      %93 = vst [vmem:[#allocation2 + $0xe8] sm:$0xff] 0.0
      %94 = vst [vmem:[#allocation2 + $0xf0] sm:$0xff] 0.0
      %95 = vst [vmem:[#allocation2 + $0xf8] sm:$0xff] 0.0
      %96 = vst [vmem:[#allocation2 + $0x100] sm:$0xff] 0.0
      %97 = vst [vmem:[#allocation2 + $0x108] sm:$0xff] 0.0
      %98 = vst [vmem:[#allocation2 + $0x110] sm:$0xff] 0.0
      %99 = vst [vmem:[#allocation2 + $0x118] sm:$0xff] 0.0
      %100 = vst [vmem:[#allocation2 + $0x120] sm:$0xff] 0.0
      %101 = vst [vmem:[#allocation2 + $0x128] sm:$0xff] 0.0
      %102 = vst [vmem:[#allocation2 + $0x130] sm:$0xff] 0.0
      %103 = vst [vmem:[#allocation2 + $0x138] sm:$0xff] 0.0
      %104 = vst [vmem:[#allocation2 + $0x140] sm:$0xff] 0.0
      %105 = vst [vmem:[#allocation2 + $0x148] sm:$0xff] 0.0
      %106 = vst [vmem:[#allocation2 + $0x150] sm:$0xff] 0.0
      %107 = vst [vmem:[#allocation2 + $0x158] sm:$0xff] 0.0
      %108 = vst [vmem:[#allocation2 + $0x160] sm:$0xff] 0.0
      %109 = vst [vmem:[#allocation2 + $0x168] sm:$0xff] 0.0
      %110 = vst [vmem:[#allocation2 + $0x170] sm:$0xff] 0.0
      %111 = vst [vmem:[#allocation2 + $0x178] sm:$0xff] 0.0
      %112 = vst [vmem:[#allocation2 + $0x180] sm:$0xff] 0.0
      %113 = vst [vmem:[#allocation2 + $0x188] sm:$0xff] 0.0
      %114 = vst [vmem:[#allocation2 + $0x190] sm:$0xff] 0.0
      %115 = vst [vmem:[#allocation2 + $0x198] sm:$0xff] 0.0
      %116 = vst [vmem:[#allocation2 + $0x1a0] sm:$0xff] 0.0
      %117 = vst [vmem:[#allocation2 + $0x1a8] sm:$0xff] 0.0
      %118 = vst [vmem:[#allocation2 + $0x1b0] sm:$0xff] 0.0
      %119 = vst [vmem:[#allocation2 + $0x1b8] sm:$0xff] 0.0
      %120 = vst [vmem:[#allocation2 + $0x1c0] sm:$0xff] 0.0
      %121 = vst [vmem:[#allocation2 + $0x1c8] sm:$0xff] 0.0
      %122 = vst [vmem:[#allocation2 + $0x1d0] sm:$0xff] 0.0
      %123 = vst [vmem:[#allocation2 + $0x1d8] sm:$0xff] 0.0
      %124 = vst [vmem:[#allocation2 + $0x1e0] sm:$0xff] 0.0
      %125 = vst [vmem:[#allocation2 + $0x1e8] sm:$0xff] 0.0
      %126 = vst [vmem:[#allocation2 + $0x1f0] sm:$0xff] 0.0
      %127 = vst [vmem:[#allocation2 + $0x1f8] sm:$0xff] 0.0
    $region29: #{tpu_custom_call.1} parent=1 // pred_fallthru
      _
    %v128 = vld [vmem:[#allocation2] sm:$0xff]
    %v129 = vld [vmem:[#allocation2 + $0x8] sm:$0xff]
    %v130 = vld [vmem:[#allocation2 + $0x10] sm:$0xff]
    %v131 = vld [vmem:[#allocation2 + $0x18] sm:$0xff]
    %v132 = vld [vmem:[#allocation2 + $0x20] sm:$0xff]
    %v133 = vld [vmem:[#allocation2 + $0x28] sm:$0xff]
    %v134 = vld [vmem:[#allocation2 + $0x30] sm:$0xff]
    %v135 = vld [vmem:[#allocation2 + $0x38] sm:$0xff]
    %v136 = vld [vmem:[#allocation2 + $0x40] sm:$0xff]
    %v137 = vld [vmem:[#allocation2 + $0x48] sm:$0xff]
    %v138 = vld [vmem:[#allocation2 + $0x50] sm:$0xff]
    %v139 = vld [vmem:[#allocation2 + $0x58] sm:$0xff]
    %v140 = vld [vmem:[#allocation2 + $0x60] sm:$0xff]
    %v141 = vld [vmem:[#allocation2 + $0x68] sm:$0xff]
    %v142 = vld [vmem:[#allocation2 + $0x70] sm:$0xff]
    %v143 = vld [vmem:[#allocation2 + $0x78] sm:$0xff]
    %v144 = vld [vmem:[#allocation2 + $0x80] sm:$0xff]
    %v145 = vld [vmem:[#allocation2 + $0x88] sm:$0xff]
    %v146 = vld [vmem:[#allocation2 + $0x90] sm:$0xff]
    %v147 = vld [vmem:[#allocation2 + $0x98] sm:$0xff]
    %v148 = vld [vmem:[#allocation2 + $0xa0] sm:$0xff]
    %v149 = vld [vmem:[#allocation2 + $0xa8] sm:$0xff]
    %v150 = vld [vmem:[#allocation2 + $0xb0] sm:$0xff]
    %v151 = vld [vmem:[#allocation2 + $0xb8] sm:$0xff]
    %v152 = vld [vmem:[#allocation2 + $0xc0] sm:$0xff]
    %v153 = vld [vmem:[#allocation2 + $0xc8] sm:$0xff]
    %v154 = vld [vmem:[#allocation2 + $0xd0] sm:$0xff]
    %v155 = vld [vmem:[#allocation2 + $0xd8] sm:$0xff]
    %v156 = vld [vmem:[#allocation2 + $0xe0] sm:$0xff]
    %v157 = vld [vmem:[#allocation2 + $0xe8] sm:$0xff]
    %v158 = vld [vmem:[#allocation2 + $0xf0] sm:$0xff]
    %v159 = vld [vmem:[#allocation2 + $0xf8] sm:$0xff]
    %v160 = vld [vmem:[#allocation2 + $0x100] sm:$0xff]
    %v161 = vld [vmem:[#allocation2 + $0x108] sm:$0xff]
    %v162 = vld [vmem:[#allocation2 + $0x110] sm:$0xff]
    %v163 = vld [vmem:[#allocation2 + $0x118] sm:$0xff]
    %v164 = vld [vmem:[#allocation2 + $0x120] sm:$0xff]
    %v165 = vld [vmem:[#allocation2 + $0x128] sm:$0xff]
    %v166 = vld [vmem:[#allocation2 + $0x130] sm:$0xff]
    %v167 = vld [vmem:[#allocation2 + $0x138] sm:$0xff]
    %v168 = vld [vmem:[#allocation2 + $0x140] sm:$0xff]
    %v169 = vld [vmem:[#allocation2 + $0x148] sm:$0xff]
    %v170 = vld [vmem:[#allocation2 + $0x150] sm:$0xff]
    %v171 = vld [vmem:[#allocation2 + $0x158] sm:$0xff]
    %v172 = vld [vmem:[#allocation2 + $0x160] sm:$0xff]
    %v173 = vld [vmem:[#allocation2 + $0x168] sm:$0xff]
    %v174 = vld [vmem:[#allocation2 + $0x170] sm:$0xff]
    %v175 = vld [vmem:[#allocation2 + $0x178] sm:$0xff]
    %v176 = vld [vmem:[#allocation2 + $0x180] sm:$0xff]
    %v177 = vld [vmem:[#allocation2 + $0x188] sm:$0xff]
    %v178 = vld [vmem:[#allocation2 + $0x190] sm:$0xff]
    %v179 = vld [vmem:[#allocation2 + $0x198] sm:$0xff]
    %v180 = vld [vmem:[#allocation2 + $0x1a0] sm:$0xff]
    %v181 = vld [vmem:[#allocation2 + $0x1a8] sm:$0xff]
    %v182 = vld [vmem:[#allocation2 + $0x1b0] sm:$0xff]
    %v183 = vld [vmem:[#allocation2 + $0x1b8] sm:$0xff]
    %v184 = vld [vmem:[#allocation2 + $0x1c0] sm:$0xff]
    %v185 = vld [vmem:[#allocation2 + $0x1c8] sm:$0xff]
    %v186 = vld [vmem:[#allocation2 + $0x1d0] sm:$0xff]
    %v187 = vld [vmem:[#allocation2 + $0x1d8] sm:$0xff]
    %v188 = vld [vmem:[#allocation2 + $0x1e0] sm:$0xff]
    %v189 = vld [vmem:[#allocation2 + $0x1e8] sm:$0xff]
    %v190 = vld [vmem:[#allocation2 + $0x1f0] sm:$0xff]
    %v191 = vld [vmem:[#allocation2 + $0x1f8] sm:$0xff]
    %v192 = vld [vmem:[#allocation3] sm:$0xff]
    %v193 = vld [vmem:[#allocation3 + $0x8] sm:$0xff]
    %v194 = vld [vmem:[#allocation3 + $0x10] sm:$0xff]
    %v195 = vld [vmem:[#allocation3 + $0x18] sm:$0xff]
    %v196 = vld [vmem:[#allocation3 + $0x20] sm:$0xff]
    %v197 = vld [vmem:[#allocation3 + $0x28] sm:$0xff]
    %v198 = vld [vmem:[#allocation3 + $0x30] sm:$0xff]
    %v199 = vld [vmem:[#allocation3 + $0x38] sm:$0xff]
    %v200 = vld [vmem:[#allocation3 + $0x40] sm:$0xff]
    %v201 = vld [vmem:[#allocation3 + $0x48] sm:$0xff]
    %v202 = vld [vmem:[#allocation3 + $0x50] sm:$0xff]
    %v203 = vld [vmem:[#allocation3 + $0x58] sm:$0xff]
    %v204 = vld [vmem:[#allocation3 + $0x60] sm:$0xff]
    %v205 = vld [vmem:[#allocation3 + $0x68] sm:$0xff]
    %v206 = vld [vmem:[#allocation3 + $0x70] sm:$0xff]
    %v207 = vld [vmem:[#allocation3 + $0x78] sm:$0xff]
    %v208 = vld [vmem:[#allocation3 + $0x80] sm:$0xff]
    %v209 = vld [vmem:[#allocation3 + $0x88] sm:$0xff]
    %v210 = vld [vmem:[#allocation3 + $0x90] sm:$0xff]
    %v211 = vld [vmem:[#allocation3 + $0x98] sm:$0xff]
    %v212 = vld [vmem:[#allocation3 + $0xa0] sm:$0xff]
    %v213 = vld [vmem:[#allocation3 + $0xa8] sm:$0xff]
    %v214 = vld [vmem:[#allocation3 + $0xb0] sm:$0xff]
    %v215 = vld [vmem:[#allocation3 + $0xb8] sm:$0xff]
    %v216 = vld [vmem:[#allocation3 + $0xc0] sm:$0xff]
    %v217 = vld [vmem:[#allocation3 + $0xc8] sm:$0xff]
    %v218 = vld [vmem:[#allocation3 + $0xd0] sm:$0xff]
    %v219 = vld [vmem:[#allocation3 + $0xd8] sm:$0xff]
    %v220 = vld [vmem:[#allocation3 + $0xe0] sm:$0xff]
    %v221 = vld [vmem:[#allocation3 + $0xe8] sm:$0xff]
    %v222 = vld [vmem:[#allocation3 + $0xf0] sm:$0xff]
    %v223 = vld [vmem:[#allocation3 + $0xf8] sm:$0xff]
    %v224 = vld [vmem:[#allocation3 + $0x100] sm:$0xff]
    %v225 = vld [vmem:[#allocation3 + $0x108] sm:$0xff]
    %v226 = vld [vmem:[#allocation3 + $0x110] sm:$0xff]
    %v227 = vld [vmem:[#allocation3 + $0x118] sm:$0xff]
    %v228 = vld [vmem:[#allocation3 + $0x120] sm:$0xff]
    %v229 = vld [vmem:[#allocation3 + $0x128] sm:$0xff]
    %v230 = vld [vmem:[#allocation3 + $0x130] sm:$0xff]
    %v231 = vld [vmem:[#allocation3 + $0x138] sm:$0xff]
    %v232 = vld [vmem:[#allocation3 + $0x140] sm:$0xff]
    %v233 = vld [vmem:[#allocation3 + $0x148] sm:$0xff]
    %v234 = vld [vmem:[#allocation3 + $0x150] sm:$0xff]
    %v235 = vld [vmem:[#allocation3 + $0x158] sm:$0xff]
    %v236 = vld [vmem:[#allocation3 + $0x160] sm:$0xff]
    %v237 = vld [vmem:[#allocation3 + $0x168] sm:$0xff]
    %v238 = vld [vmem:[#allocation3 + $0x170] sm:$0xff]
    %v239 = vld [vmem:[#allocation3 + $0x178] sm:$0xff]
    %v240 = vld [vmem:[#allocation3 + $0x180] sm:$0xff]
    %v241 = vld [vmem:[#allocation3 + $0x188] sm:$0xff]
    %v242 = vld [vmem:[#allocation3 + $0x190] sm:$0xff]
    %v243 = vld [vmem:[#allocation3 + $0x198] sm:$0xff]
    %v244 = vld [vmem:[#allocation3 + $0x1a0] sm:$0xff]
    %v245 = vld [vmem:[#allocation3 + $0x1a8] sm:$0xff]
    %v246 = vld [vmem:[#allocation3 + $0x1b0] sm:$0xff]
    %v247 = vld [vmem:[#allocation3 + $0x1b8] sm:$0xff]
    %v248 = vld [vmem:[#allocation3 + $0x1c0] sm:$0xff]
    %v249 = vld [vmem:[#allocation3 + $0x1c8] sm:$0xff]
    %v250 = vld [vmem:[#allocation3 + $0x1d0] sm:$0xff]
    %v251 = vld [vmem:[#allocation3 + $0x1d8] sm:$0xff]
    %v252 = vld [vmem:[#allocation3 + $0x1e0] sm:$0xff]
    %v253 = vld [vmem:[#allocation3 + $0x1e8] sm:$0xff]
    %v254 = vld [vmem:[#allocation3 + $0x1f0] sm:$0xff]
    %v255 = vld [vmem:[#allocation3 + $0x1f8] sm:$0xff]
    %v256 = vld [vmem:[#allocation6] sm:$0xff]
    %v257 = vld [vmem:[#allocation6 + $0x8] sm:$0xff]
    %v258 = vld [vmem:[#allocation6 + $0x10] sm:$0xff]
    %v259 = vld [vmem:[#allocation6 + $0x18] sm:$0xff]
    %v260 = vld [vmem:[#allocation6 + $0x20] sm:$0xff]
    %v261 = vld [vmem:[#allocation6 + $0x28] sm:$0xff]
    %v262 = vld [vmem:[#allocation6 + $0x30] sm:$0xff]
    %v263 = vld [vmem:[#allocation6 + $0x38] sm:$0xff]
    %v264 = vld [vmem:[#allocation6 + $0x40] sm:$0xff]
    %v265 = vld [vmem:[#allocation6 + $0x48] sm:$0xff]
    %v266 = vld [vmem:[#allocation6 + $0x50] sm:$0xff]
    %v267 = vld [vmem:[#allocation6 + $0x58] sm:$0xff]
    %v268 = vld [vmem:[#allocation6 + $0x60] sm:$0xff]
    %v269 = vld [vmem:[#allocation6 + $0x68] sm:$0xff]
    %v270 = vld [vmem:[#allocation6 + $0x70] sm:$0xff]
    %v271 = vld [vmem:[#allocation6 + $0x78] sm:$0xff]
    %v272 = vld [vmem:[#allocation6 + $0x80] sm:$0xff]
    %v273 = vld [vmem:[#allocation6 + $0x88] sm:$0xff]
    %v274 = vld [vmem:[#allocation6 + $0x90] sm:$0xff]
    %v275 = vld [vmem:[#allocation6 + $0x98] sm:$0xff]
    %v276 = vld [vmem:[#allocation6 + $0xa0] sm:$0xff]
    %v277 = vld [vmem:[#allocation6 + $0xa8] sm:$0xff]
    %v278 = vld [vmem:[#allocation6 + $0xb0] sm:$0xff]
    %v279 = vld [vmem:[#allocation6 + $0xb8] sm:$0xff]
    %v280 = vld [vmem:[#allocation6 + $0xc0] sm:$0xff]
    %v281 = vld [vmem:[#allocation6 + $0xc8] sm:$0xff]
    %v282 = vld [vmem:[#allocation6 + $0xd0] sm:$0xff]
    %v283 = vld [vmem:[#allocation6 + $0xd8] sm:$0xff]
    %v284 = vld [vmem:[#allocation6 + $0xe0] sm:$0xff]
    %v285 = vld [vmem:[#allocation6 + $0xe8] sm:$0xff]
    %v286 = vld [vmem:[#allocation6 + $0xf0] sm:$0xff]
    %v287 = vld [vmem:[#allocation6 + $0xf8] sm:$0xff]
    %v288 = vld [vmem:[#allocation6 + $0x100] sm:$0xff]
    %v289 = vld [vmem:[#allocation6 + $0x108] sm:$0xff]
    %v290 = vld [vmem:[#allocation6 + $0x110] sm:$0xff]
    %v291 = vld [vmem:[#allocation6 + $0x118] sm:$0xff]
    %v292 = vld [vmem:[#allocation6 + $0x120] sm:$0xff]
    %v293 = vld [vmem:[#allocation6 + $0x128] sm:$0xff]
    %v294 = vld [vmem:[#allocation6 + $0x130] sm:$0xff]
    %v295 = vld [vmem:[#allocation6 + $0x138] sm:$0xff]
    %v296 = vld [vmem:[#allocation6 + $0x140] sm:$0xff]
    %v297 = vld [vmem:[#allocation6 + $0x148] sm:$0xff]
    %v298 = vld [vmem:[#allocation6 + $0x150] sm:$0xff]
    %v299 = vld [vmem:[#allocation6 + $0x158] sm:$0xff]
    %v300 = vld [vmem:[#allocation6 + $0x160] sm:$0xff]
    %v301 = vld [vmem:[#allocation6 + $0x168] sm:$0xff]
    %v302 = vld [vmem:[#allocation6 + $0x170] sm:$0xff]
    %v303 = vld [vmem:[#allocation6 + $0x178] sm:$0xff]
    %v304 = vld [vmem:[#allocation6 + $0x180] sm:$0xff]
    %v305 = vld [vmem:[#allocation6 + $0x188] sm:$0xff]
    %v306 = vld [vmem:[#allocation6 + $0x190] sm:$0xff]
    %v307 = vld [vmem:[#allocation6 + $0x198] sm:$0xff]
    %v308 = vld [vmem:[#allocation6 + $0x1a0] sm:$0xff]
    %v309 = vld [vmem:[#allocation6 + $0x1a8] sm:$0xff]
    %v310 = vld [vmem:[#allocation6 + $0x1b0] sm:$0xff]
    %v311 = vld [vmem:[#allocation6 + $0x1b8] sm:$0xff]
    %v312 = vld [vmem:[#allocation6 + $0x1c0] sm:$0xff]
    %v313 = vld [vmem:[#allocation6 + $0x1c8] sm:$0xff]
    %v314 = vld [vmem:[#allocation6 + $0x1d0] sm:$0xff]
    %v315 = vld [vmem:[#allocation6 + $0x1d8] sm:$0xff]
    %v316 = vld [vmem:[#allocation6 + $0x1e0] sm:$0xff]
    %v317 = vld [vmem:[#allocation6 + $0x1e8] sm:$0xff]
    %v318 = vld [vmem:[#allocation6 + $0x1f0] sm:$0xff]
    %v319 = vld [vmem:[#allocation6 + $0x1f8] sm:$0xff]
    %v384 = vunpack.c.l.b16 %v192
    %v385 = vunpack.c.h.b16 %v192
    %v386 = vunpack.c.l.b16 %v193
    %v387 = vunpack.c.h.b16 %v193
    %v388 = vunpack.c.l.b16 %v194
    %v389 = vunpack.c.h.b16 %v194
    %v390 = vunpack.c.l.b16 %v195
    %v391 = vunpack.c.h.b16 %v195
    %v392 = vunpack.c.l.b16 %v196
    %v393 = vunpack.c.h.b16 %v196
    %v394 = vunpack.c.l.b16 %v197
    %v395 = vunpack.c.h.b16 %v197
    %v396 = vunpack.c.l.b16 %v198
    %v397 = vunpack.c.h.b16 %v198
    %v398 = vunpack.c.l.b16 %v199
    %v399 = vunpack.c.h.b16 %v199
    %v400 = vunpack.c.l.b16 %v200
    %v401 = vunpack.c.h.b16 %v200
    %v402 = vunpack.c.l.b16 %v201
    %v403 = vunpack.c.h.b16 %v201
    %v404 = vunpack.c.l.b16 %v202
    %v405 = vunpack.c.h.b16 %v202
    %v406 = vunpack.c.l.b16 %v203
    %v407 = vunpack.c.h.b16 %v203
    %v408 = vunpack.c.l.b16 %v204
    %v409 = vunpack.c.h.b16 %v204
    %v410 = vunpack.c.l.b16 %v205
    %v411 = vunpack.c.h.b16 %v205
    %v412 = vunpack.c.l.b16 %v206
    %v413 = vunpack.c.h.b16 %v206
    %v414 = vunpack.c.l.b16 %v207
    %v415 = vunpack.c.h.b16 %v207
    %v416 = vunpack.c.l.b16 %v208
    %v417 = vunpack.c.h.b16 %v208
    %v418 = vunpack.c.l.b16 %v209
    %v419 = vunpack.c.h.b16 %v209
    %v420 = vunpack.c.l.b16 %v210
    %v421 = vunpack.c.h.b16 %v210
    %v422 = vunpack.c.l.b16 %v211
    %v423 = vunpack.c.h.b16 %v211
    %v424 = vunpack.c.l.b16 %v212
    %v425 = vunpack.c.h.b16 %v212
    %v426 = vunpack.c.l.b16 %v213
    %v427 = vunpack.c.h.b16 %v213
    %v428 = vunpack.c.l.b16 %v214
    %v429 = vunpack.c.h.b16 %v214
    %v430 = vunpack.c.l.b16 %v215
    %v431 = vunpack.c.h.b16 %v215
    %v432 = vunpack.c.l.b16 %v216
    %v433 = vunpack.c.h.b16 %v216
    %v434 = vunpack.c.l.b16 %v217
    %v435 = vunpack.c.h.b16 %v217
    %v436 = vunpack.c.l.b16 %v218
    %v437 = vunpack.c.h.b16 %v218
    %v438 = vunpack.c.l.b16 %v219
    %v439 = vunpack.c.h.b16 %v219
    %v440 = vunpack.c.l.b16 %v220
    %v441 = vunpack.c.h.b16 %v220
    %v442 = vunpack.c.l.b16 %v221
    %v443 = vunpack.c.h.b16 %v221
    %v444 = vunpack.c.l.b16 %v222
    %v445 = vunpack.c.h.b16 %v222
    %v446 = vunpack.c.l.b16 %v223
    %v447 = vunpack.c.h.b16 %v223
    %v448 = vunpack.c.l.b16 %v224
    %v449 = vunpack.c.h.b16 %v224
    %v450 = vunpack.c.l.b16 %v225
    %v451 = vunpack.c.h.b16 %v225
    %v452 = vunpack.c.l.b16 %v226
    %v453 = vunpack.c.h.b16 %v226
    %v454 = vunpack.c.l.b16 %v227
    %v455 = vunpack.c.h.b16 %v227
    %v456 = vunpack.c.l.b16 %v228
    %v457 = vunpack.c.h.b16 %v228
    %v458 = vunpack.c.l.b16 %v229
    %v459 = vunpack.c.h.b16 %v229
    %v460 = vunpack.c.l.b16 %v230
    %v461 = vunpack.c.h.b16 %v230
    %v462 = vunpack.c.l.b16 %v231
    %v463 = vunpack.c.h.b16 %v231
    %v464 = vunpack.c.l.b16 %v232
    %v465 = vunpack.c.h.b16 %v232
    %v466 = vunpack.c.l.b16 %v233
    %v467 = vunpack.c.h.b16 %v233
    %v468 = vunpack.c.l.b16 %v234
    %v469 = vunpack.c.h.b16 %v234
    %v470 = vunpack.c.l.b16 %v235
    %v471 = vunpack.c.h.b16 %v235
    %v472 = vunpack.c.l.b16 %v236
    %v473 = vunpack.c.h.b16 %v236
    %v474 = vunpack.c.l.b16 %v237
    %v475 = vunpack.c.h.b16 %v237
    %v476 = vunpack.c.l.b16 %v238
    %v477 = vunpack.c.h.b16 %v238
    %v478 = vunpack.c.l.b16 %v239
    %v479 = vunpack.c.h.b16 %v239
    %v480 = vunpack.c.l.b16 %v240
    %v481 = vunpack.c.h.b16 %v240
    %v482 = vunpack.c.l.b16 %v241
    %v483 = vunpack.c.h.b16 %v241
    %v484 = vunpack.c.l.b16 %v242
    %v485 = vunpack.c.h.b16 %v242
    %v486 = vunpack.c.l.b16 %v243
    %v487 = vunpack.c.h.b16 %v243
    %v488 = vunpack.c.l.b16 %v244
    %v489 = vunpack.c.h.b16 %v244
    %v490 = vunpack.c.l.b16 %v245
    %v491 = vunpack.c.h.b16 %v245
    %v492 = vunpack.c.l.b16 %v246
    %v493 = vunpack.c.h.b16 %v246
    %v494 = vunpack.c.l.b16 %v247
    %v495 = vunpack.c.h.b16 %v247
    %v496 = vunpack.c.l.b16 %v248
    %v497 = vunpack.c.h.b16 %v248
    %v498 = vunpack.c.l.b16 %v249
    %v499 = vunpack.c.h.b16 %v249
    %v500 = vunpack.c.l.b16 %v250
    %v501 = vunpack.c.h.b16 %v250
    %v502 = vunpack.c.l.b16 %v251
    %v503 = vunpack.c.h.b16 %v251
    %v504 = vunpack.c.l.b16 %v252
    %v505 = vunpack.c.h.b16 %v252
    %v506 = vunpack.c.l.b16 %v253
    %v507 = vunpack.c.h.b16 %v253
    %v508 = vunpack.c.l.b16 %v254
    %v509 = vunpack.c.h.b16 %v254
    %v510 = vunpack.c.l.b16 %v255
    %v511 = vunpack.c.h.b16 %v255
    %v512 = vpack.c.b16 %v388, %v384
    %v513 = vpack.c.b16 %v389, %v385
    %v514 = vpack.c.b16 %v390, %v386
    %v515 = vpack.c.b16 %v391, %v387
    %v516 = vpack.c.b16 %v396, %v392
    %v517 = vpack.c.b16 %v397, %v393
    %v518 = vpack.c.b16 %v398, %v394
    %v519 = vpack.c.b16 %v399, %v395
    %v520 = vpack.c.b16 %v404, %v400
    %v521 = vpack.c.b16 %v405, %v401
    %v522 = vpack.c.b16 %v406, %v402
    %v523 = vpack.c.b16 %v407, %v403
    %v524 = vpack.c.b16 %v412, %v408
    %v525 = vpack.c.b16 %v413, %v409
    %v526 = vpack.c.b16 %v414, %v410
    %v527 = vpack.c.b16 %v415, %v411
    %v528 = vpack.c.b16 %v420, %v416
    %v529 = vpack.c.b16 %v421, %v417
    %v530 = vpack.c.b16 %v422, %v418
    %v531 = vpack.c.b16 %v423, %v419
    %v532 = vpack.c.b16 %v428, %v424
    %v533 = vpack.c.b16 %v429, %v425
    %v534 = vpack.c.b16 %v430, %v426
    %v535 = vpack.c.b16 %v431, %v427
    %v536 = vpack.c.b16 %v436, %v432
    %v537 = vpack.c.b16 %v437, %v433
    %v538 = vpack.c.b16 %v438, %v434
    %v539 = vpack.c.b16 %v439, %v435
    %v540 = vpack.c.b16 %v444, %v440
    %v541 = vpack.c.b16 %v445, %v441
    %v542 = vpack.c.b16 %v446, %v442
    %v543 = vpack.c.b16 %v447, %v443
    %v544 = vpack.c.b16 %v452, %v448
    %v545 = vpack.c.b16 %v453, %v449
    %v546 = vpack.c.b16 %v454, %v450
    %v547 = vpack.c.b16 %v455, %v451
    %v548 = vpack.c.b16 %v460, %v456
    %v549 = vpack.c.b16 %v461, %v457
    %v550 = vpack.c.b16 %v462, %v458
    %v551 = vpack.c.b16 %v463, %v459
    %v552 = vpack.c.b16 %v468, %v464
    %v553 = vpack.c.b16 %v469, %v465
    %v554 = vpack.c.b16 %v470, %v466
    %v555 = vpack.c.b16 %v471, %v467
    %v556 = vpack.c.b16 %v476, %v472
    %v557 = vpack.c.b16 %v477, %v473
    %v558 = vpack.c.b16 %v478, %v474
    %v559 = vpack.c.b16 %v479, %v475
    %v560 = vpack.c.b16 %v484, %v480
    %v561 = vpack.c.b16 %v485, %v481
    %v562 = vpack.c.b16 %v486, %v482
    %v563 = vpack.c.b16 %v487, %v483
    %v564 = vpack.c.b16 %v492, %v488
    %v565 = vpack.c.b16 %v493, %v489
    %v566 = vpack.c.b16 %v494, %v490
    %v567 = vpack.c.b16 %v495, %v491
    %v568 = vpack.c.b16 %v500, %v496
    %v569 = vpack.c.b16 %v501, %v497
    %v570 = vpack.c.b16 %v502, %v498
    %v571 = vpack.c.b16 %v503, %v499
    %v572 = vpack.c.b16 %v508, %v504
    %v573 = vpack.c.b16 %v509, %v505
    %v574 = vpack.c.b16 %v510, %v506
    %v575 = vpack.c.b16 %v511, %v507
    %v704 = vunpack.c.l.b16 %v256
    %v705 = vunpack.c.h.b16 %v256
    %v706 = vunpack.c.l.b16 %v257
    %v707 = vunpack.c.h.b16 %v257
    %v708 = vunpack.c.l.b16 %v258
    %v709 = vunpack.c.h.b16 %v258
    %v710 = vunpack.c.l.b16 %v259
    %v711 = vunpack.c.h.b16 %v259
    %v712 = vunpack.c.l.b16 %v260
    %v713 = vunpack.c.h.b16 %v260
    %v714 = vunpack.c.l.b16 %v261
    %v715 = vunpack.c.h.b16 %v261
    %v716 = vunpack.c.l.b16 %v262
    %v717 = vunpack.c.h.b16 %v262
    %v718 = vunpack.c.l.b16 %v263
    %v719 = vunpack.c.h.b16 %v263
    %v720 = vunpack.c.l.b16 %v264
    %v721 = vunpack.c.h.b16 %v264
    %v722 = vunpack.c.l.b16 %v265
    %v723 = vunpack.c.h.b16 %v265
    %v724 = vunpack.c.l.b16 %v266
    %v725 = vunpack.c.h.b16 %v266
    %v726 = vunpack.c.l.b16 %v267
    %v727 = vunpack.c.h.b16 %v267
    %v728 = vunpack.c.l.b16 %v268
    %v729 = vunpack.c.h.b16 %v268
    %v730 = vunpack.c.l.b16 %v269
    %v731 = vunpack.c.h.b16 %v269
    %v732 = vunpack.c.l.b16 %v270
    %v733 = vunpack.c.h.b16 %v270
    %v734 = vunpack.c.l.b16 %v271
    %v735 = vunpack.c.h.b16 %v271
    %v736 = vunpack.c.l.b16 %v272
    %v737 = vunpack.c.h.b16 %v272
    %v738 = vunpack.c.l.b16 %v273
    %v739 = vunpack.c.h.b16 %v273
    %v740 = vunpack.c.l.b16 %v274
    %v741 = vunpack.c.h.b16 %v274
    %v742 = vunpack.c.l.b16 %v275
    %v743 = vunpack.c.h.b16 %v275
    %v744 = vunpack.c.l.b16 %v276
    %v745 = vunpack.c.h.b16 %v276
    %v746 = vunpack.c.l.b16 %v277
    %v747 = vunpack.c.h.b16 %v277
    %v748 = vunpack.c.l.b16 %v278
    %v749 = vunpack.c.h.b16 %v278
    %v750 = vunpack.c.l.b16 %v279
    %v751 = vunpack.c.h.b16 %v279
    %v752 = vunpack.c.l.b16 %v280
    %v753 = vunpack.c.h.b16 %v280
    %v754 = vunpack.c.l.b16 %v281
    %v755 = vunpack.c.h.b16 %v281
    %v756 = vunpack.c.l.b16 %v282
    %v757 = vunpack.c.h.b16 %v282
    %v758 = vunpack.c.l.b16 %v283
    %v759 = vunpack.c.h.b16 %v283
    %v760 = vunpack.c.l.b16 %v284
    %v761 = vunpack.c.h.b16 %v284
    %v762 = vunpack.c.l.b16 %v285
    %v763 = vunpack.c.h.b16 %v285
    %v764 = vunpack.c.l.b16 %v286
    %v765 = vunpack.c.h.b16 %v286
    %v766 = vunpack.c.l.b16 %v287
    %v767 = vunpack.c.h.b16 %v287
    %v768 = vunpack.c.l.b16 %v288
    %v769 = vunpack.c.h.b16 %v288
    %v770 = vunpack.c.l.b16 %v289
    %v771 = vunpack.c.h.b16 %v289
    %v772 = vunpack.c.l.b16 %v290
    %v773 = vunpack.c.h.b16 %v290
    %v774 = vunpack.c.l.b16 %v291
    %v775 = vunpack.c.h.b16 %v291
    %v776 = vunpack.c.l.b16 %v292
    %v777 = vunpack.c.h.b16 %v292
    %v778 = vunpack.c.l.b16 %v293
    %v779 = vunpack.c.h.b16 %v293
    %v780 = vunpack.c.l.b16 %v294
    %v781 = vunpack.c.h.b16 %v294
    %v782 = vunpack.c.l.b16 %v295
    %v783 = vunpack.c.h.b16 %v295
    %v784 = vunpack.c.l.b16 %v296
    %v785 = vunpack.c.h.b16 %v296
    %v786 = vunpack.c.l.b16 %v297
    %v787 = vunpack.c.h.b16 %v297
    %v788 = vunpack.c.l.b16 %v298
    %v789 = vunpack.c.h.b16 %v298
    %v790 = vunpack.c.l.b16 %v299
    %v791 = vunpack.c.h.b16 %v299
    %v792 = vunpack.c.l.b16 %v300
    %v793 = vunpack.c.h.b16 %v300
    %v794 = vunpack.c.l.b16 %v301
    %v795 = vunpack.c.h.b16 %v301
    %v796 = vunpack.c.l.b16 %v302
    %v797 = vunpack.c.h.b16 %v302
    %v798 = vunpack.c.l.b16 %v303
    %v799 = vunpack.c.h.b16 %v303
    %v800 = vunpack.c.l.b16 %v304
    %v801 = vunpack.c.h.b16 %v304
    %v802 = vunpack.c.l.b16 %v305
    %v803 = vunpack.c.h.b16 %v305
    %v804 = vunpack.c.l.b16 %v306
    %v805 = vunpack.c.h.b16 %v306
    %v806 = vunpack.c.l.b16 %v307
    %v807 = vunpack.c.h.b16 %v307
    %v808 = vunpack.c.l.b16 %v308
    %v809 = vunpack.c.h.b16 %v308
    %v810 = vunpack.c.l.b16 %v309
    %v811 = vunpack.c.h.b16 %v309
    %v812 = vunpack.c.l.b16 %v310
    %v813 = vunpack.c.h.b16 %v310
    %v814 = vunpack.c.l.b16 %v311
    %v815 = vunpack.c.h.b16 %v311
    %v816 = vunpack.c.l.b16 %v312
    %v817 = vunpack.c.h.b16 %v312
    %v818 = vunpack.c.l.b16 %v313
    %v819 = vunpack.c.h.b16 %v313
    %v820 = vunpack.c.l.b16 %v314
    %v821 = vunpack.c.h.b16 %v314
    %v822 = vunpack.c.l.b16 %v315
    %v823 = vunpack.c.h.b16 %v315
    %v824 = vunpack.c.l.b16 %v316
    %v825 = vunpack.c.h.b16 %v316
    %v826 = vunpack.c.l.b16 %v317
    %v827 = vunpack.c.h.b16 %v317
    %v828 = vunpack.c.l.b16 %v318
    %v829 = vunpack.c.h.b16 %v318
    %v830 = vunpack.c.l.b16 %v319
    %v831 = vunpack.c.h.b16 %v319
    %v832 = vpack.c.b16 %v706, %v704
    %v833 = vpack.c.b16 %v707, %v705
    %v834 = vpack.c.b16 %v710, %v708
    %v835 = vpack.c.b16 %v711, %v709
    %v836 = vpack.c.b16 %v714, %v712
    %v837 = vpack.c.b16 %v715, %v713
    %v838 = vpack.c.b16 %v718, %v716
    %v839 = vpack.c.b16 %v719, %v717
    %v840 = vpack.c.b16 %v722, %v720
    %v841 = vpack.c.b16 %v723, %v721
    %v842 = vpack.c.b16 %v726, %v724
    %v843 = vpack.c.b16 %v727, %v725
    %v844 = vpack.c.b16 %v730, %v728
    %v845 = vpack.c.b16 %v731, %v729
    %v846 = vpack.c.b16 %v734, %v732
    %v847 = vpack.c.b16 %v735, %v733
    %v848 = vpack.c.b16 %v738, %v736
    %v849 = vpack.c.b16 %v739, %v737
    %v850 = vpack.c.b16 %v742, %v740
    %v851 = vpack.c.b16 %v743, %v741
    %v852 = vpack.c.b16 %v746, %v744
    %v853 = vpack.c.b16 %v747, %v745
    %v854 = vpack.c.b16 %v750, %v748
    %v855 = vpack.c.b16 %v751, %v749
    %v856 = vpack.c.b16 %v754, %v752
    %v857 = vpack.c.b16 %v755, %v753
    %v858 = vpack.c.b16 %v758, %v756
    %v859 = vpack.c.b16 %v759, %v757
    %v860 = vpack.c.b16 %v762, %v760
    %v861 = vpack.c.b16 %v763, %v761
    %v862 = vpack.c.b16 %v766, %v764
    %v863 = vpack.c.b16 %v767, %v765
    %v864 = vpack.c.b16 %v770, %v768
    %v865 = vpack.c.b16 %v771, %v769
    %v866 = vpack.c.b16 %v774, %v772
    %v867 = vpack.c.b16 %v775, %v773
    %v868 = vpack.c.b16 %v778, %v776
    %v869 = vpack.c.b16 %v779, %v777
    %v870 = vpack.c.b16 %v782, %v780
    %v871 = vpack.c.b16 %v783, %v781
    %v872 = vpack.c.b16 %v786, %v784
    %v873 = vpack.c.b16 %v787, %v785
    %v874 = vpack.c.b16 %v790, %v788
    %v875 = vpack.c.b16 %v791, %v789
    %v876 = vpack.c.b16 %v794, %v792
    %v877 = vpack.c.b16 %v795, %v793
    %v878 = vpack.c.b16 %v798, %v796
    %v879 = vpack.c.b16 %v799, %v797
    %v880 = vpack.c.b16 %v802, %v800
    %v881 = vpack.c.b16 %v803, %v801
    %v882 = vpack.c.b16 %v806, %v804
    %v883 = vpack.c.b16 %v807, %v805
    %v884 = vpack.c.b16 %v810, %v808
    %v885 = vpack.c.b16 %v811, %v809
    %v886 = vpack.c.b16 %v814, %v812
    %v887 = vpack.c.b16 %v815, %v813
    %v888 = vpack.c.b16 %v818, %v816
    %v889 = vpack.c.b16 %v819, %v817
    %v890 = vpack.c.b16 %v822, %v820
    %v891 = vpack.c.b16 %v823, %v821
    %v892 = vpack.c.b16 %v826, %v824
    %v893 = vpack.c.b16 %v827, %v825
    %v894 = vpack.c.b16 %v830, %v828
    %v895 = vpack.c.b16 %v831, %v829
    %960 = vmatpush.bf16.msra.mxu0 %v846
    %961 = vmatpush.bf16.msra.mxu0 %v844
    %962 = vmatpush.bf16.msra.mxu0 %v842
    %963 = vmatpush.bf16.msra.mxu0 %v840
    %964 = vmatpush.bf16.msra.mxu0 %v838
    %965 = vmatpush.bf16.msra.mxu0 %v836
    %966 = vmatpush.bf16.msra.mxu0 %v834
    %967 = vmatpush.bf16.msra.mxu0 %v832
    %968 = vmatmul.bf16.gmra.mxu0 %v512
    %v969 = vpop.f32.mrf.mxu0
    %v970 = vadd.f32 0.0, %v969
    %v971 = vpop.f32.mrf.mxu0
    %v972 = vadd.f32 0.0, %v971
    %973 = vmatmul.bf16.gmra.mxu0 %v516
    %v974 = vpop.f32.mrf.mxu0
    %v975 = vadd.f32 0.0, %v974
    %v976 = vpop.f32.mrf.mxu0
    %v977 = vadd.f32 0.0, %v976
    %978 = vmatmul.bf16.gmra.mxu0 %v520
    %v979 = vpop.f32.mrf.mxu0
    %v980 = vadd.f32 0.0, %v979
    %v981 = vpop.f32.mrf.mxu0
    %v982 = vadd.f32 0.0, %v981
    %983 = vmatmul.bf16.gmra.mxu0 %v524
    %v984 = vpop.f32.mrf.mxu0
    %v985 = vadd.f32 0.0, %v984
    %v986 = vpop.f32.mrf.mxu0
    %v987 = vadd.f32 0.0, %v986
    %988 = vmatmul.bf16.gmra.mxu0 %v528
    %v989 = vpop.f32.mrf.mxu0
    %v990 = vadd.f32 0.0, %v989
    %v991 = vpop.f32.mrf.mxu0
    %v992 = vadd.f32 0.0, %v991
    %993 = vmatmul.bf16.gmra.mxu0 %v532
    %v994 = vpop.f32.mrf.mxu0
    %v995 = vadd.f32 0.0, %v994
    %v996 = vpop.f32.mrf.mxu0
    %v997 = vadd.f32 0.0, %v996
    %998 = vmatmul.bf16.gmra.mxu0 %v536
    %v999 = vpop.f32.mrf.mxu0
    %v1000 = vadd.f32 0.0, %v999
    %v1001 = vpop.f32.mrf.mxu0
    %v1002 = vadd.f32 0.0, %v1001
    %1003 = vmatmul.bf16.gmra.mxu0 %v540
    %v1004 = vpop.f32.mrf.mxu0
    %v1005 = vadd.f32 0.0, %v1004
    %v1006 = vpop.f32.mrf.mxu0
    %v1007 = vadd.f32 0.0, %v1006
    %1008 = vmatmul.bf16.gmra.mxu0 %v544
    %v1009 = vpop.f32.mrf.mxu0
    %v1010 = vadd.f32 0.0, %v1009
    %v1011 = vpop.f32.mrf.mxu0
    %v1012 = vadd.f32 0.0, %v1011
    %1013 = vmatmul.bf16.gmra.mxu0 %v548
    %v1014 = vpop.f32.mrf.mxu0
    %v1015 = vadd.f32 0.0, %v1014
    %v1016 = vpop.f32.mrf.mxu0
    %v1017 = vadd.f32 0.0, %v1016
    %1018 = vmatmul.bf16.gmra.mxu0 %v552
    %v1019 = vpop.f32.mrf.mxu0
    %v1020 = vadd.f32 0.0, %v1019
    %v1021 = vpop.f32.mrf.mxu0
    %v1022 = vadd.f32 0.0, %v1021
    %1023 = vmatmul.bf16.gmra.mxu0 %v556
    %v1024 = vpop.f32.mrf.mxu0
    %v1025 = vadd.f32 0.0, %v1024
    %v1026 = vpop.f32.mrf.mxu0
    %v1027 = vadd.f32 0.0, %v1026
    %1028 = vmatmul.bf16.gmra.mxu0 %v560
    %v1029 = vpop.f32.mrf.mxu0
    %v1030 = vadd.f32 0.0, %v1029
    %v1031 = vpop.f32.mrf.mxu0
    %v1032 = vadd.f32 0.0, %v1031
    %1033 = vmatmul.bf16.gmra.mxu0 %v564
    %v1034 = vpop.f32.mrf.mxu0
    %v1035 = vadd.f32 0.0, %v1034
    %v1036 = vpop.f32.mrf.mxu0
    %v1037 = vadd.f32 0.0, %v1036
    %1038 = vmatmul.bf16.gmra.mxu0 %v568
    %v1039 = vpop.f32.mrf.mxu0
    %v1040 = vadd.f32 0.0, %v1039
    %v1041 = vpop.f32.mrf.mxu0
    %v1042 = vadd.f32 0.0, %v1041
    %1043 = vmatmul.bf16.gmra.mxu0 %v572
    %v1044 = vpop.f32.mrf.mxu0
    %v1045 = vadd.f32 0.0, %v1044
    %v1046 = vpop.f32.mrf.mxu0
    %v1047 = vadd.f32 0.0, %v1046
    %1048 = vdwg.mxu0
    %1049 = vmatpush.bf16.msra.mxu0 %v862
    %1050 = vmatpush.bf16.msra.mxu0 %v860
    %1051 = vmatpush.bf16.msra.mxu0 %v858
    %1052 = vmatpush.bf16.msra.mxu0 %v856
    %1053 = vmatpush.bf16.msra.mxu0 %v854
    %1054 = vmatpush.bf16.msra.mxu0 %v852
    %1055 = vmatpush.bf16.msra.mxu0 %v850
    %1056 = vmatpush.bf16.msra.mxu0 %v848
    %1057 = vmatmul.bf16.gmra.mxu0 %v513
    %v1058 = vpop.f32.mrf.mxu0
    %v1059 = vadd.f32 %v970, %v1058
    %v1060 = vpop.f32.mrf.mxu0
    %v1061 = vadd.f32 %v972, %v1060
    %1062 = vmatmul.bf16.gmra.mxu0 %v517
    %v1063 = vpop.f32.mrf.mxu0
    %v1064 = vadd.f32 %v975, %v1063
    %v1065 = vpop.f32.mrf.mxu0
    %v1066 = vadd.f32 %v977, %v1065
    %1067 = vmatmul.bf16.gmra.mxu0 %v521
    %v1068 = vpop.f32.mrf.mxu0
    %v1069 = vadd.f32 %v980, %v1068
    %v1070 = vpop.f32.mrf.mxu0
    %v1071 = vadd.f32 %v982, %v1070
    %1072 = vmatmul.bf16.gmra.mxu0 %v525
    %v1073 = vpop.f32.mrf.mxu0
    %v1074 = vadd.f32 %v985, %v1073
    %v1075 = vpop.f32.mrf.mxu0
    %v1076 = vadd.f32 %v987, %v1075
    %1077 = vmatmul.bf16.gmra.mxu0 %v529
    %v1078 = vpop.f32.mrf.mxu0
    %v1079 = vadd.f32 %v990, %v1078
    %v1080 = vpop.f32.mrf.mxu0
    %v1081 = vadd.f32 %v992, %v1080
    %1082 = vmatmul.bf16.gmra.mxu0 %v533
    %v1083 = vpop.f32.mrf.mxu0
    %v1084 = vadd.f32 %v995, %v1083
    %v1085 = vpop.f32.mrf.mxu0
    %v1086 = vadd.f32 %v997, %v1085
    %1087 = vmatmul.bf16.gmra.mxu0 %v537
    %v1088 = vpop.f32.mrf.mxu0
    %v1089 = vadd.f32 %v1000, %v1088
    %v1090 = vpop.f32.mrf.mxu0
    %v1091 = vadd.f32 %v1002, %v1090
    %1092 = vmatmul.bf16.gmra.mxu0 %v541
    %v1093 = vpop.f32.mrf.mxu0
    %v1094 = vadd.f32 %v1005, %v1093
    %v1095 = vpop.f32.mrf.mxu0
    %v1096 = vadd.f32 %v1007, %v1095
    %1097 = vmatmul.bf16.gmra.mxu0 %v545
    %v1098 = vpop.f32.mrf.mxu0
    %v1099 = vadd.f32 %v1010, %v1098
    %v1100 = vpop.f32.mrf.mxu0
    %v1101 = vadd.f32 %v1012, %v1100
    %1102 = vmatmul.bf16.gmra.mxu0 %v549
    %v1103 = vpop.f32.mrf.mxu0
    %v1104 = vadd.f32 %v1015, %v1103
    %v1105 = vpop.f32.mrf.mxu0
    %v1106 = vadd.f32 %v1017, %v1105
    %1107 = vmatmul.bf16.gmra.mxu0 %v553
    %v1108 = vpop.f32.mrf.mxu0
    %v1109 = vadd.f32 %v1020, %v1108
    %v1110 = vpop.f32.mrf.mxu0
    %v1111 = vadd.f32 %v1022, %v1110
    %1112 = vmatmul.bf16.gmra.mxu0 %v557
    %v1113 = vpop.f32.mrf.mxu0
    %v1114 = vadd.f32 %v1025, %v1113
    %v1115 = vpop.f32.mrf.mxu0
    %v1116 = vadd.f32 %v1027, %v1115
    %1117 = vmatmul.bf16.gmra.mxu0 %v561
    %v1118 = vpop.f32.mrf.mxu0
    %v1119 = vadd.f32 %v1030, %v1118
    %v1120 = vpop.f32.mrf.mxu0
    %v1121 = vadd.f32 %v1032, %v1120
    %1122 = vmatmul.bf16.gmra.mxu0 %v565
    %v1123 = vpop.f32.mrf.mxu0
    %v1124 = vadd.f32 %v1035, %v1123
    %v1125 = vpop.f32.mrf.mxu0
    %v1126 = vadd.f32 %v1037, %v1125
    %1127 = vmatmul.bf16.gmra.mxu0 %v569
    %v1128 = vpop.f32.mrf.mxu0
    %v1129 = vadd.f32 %v1040, %v1128
    %v1130 = vpop.f32.mrf.mxu0
    %v1131 = vadd.f32 %v1042, %v1130
    %1132 = vmatmul.bf16.gmra.mxu0 %v573
    %v1133 = vpop.f32.mrf.mxu0
    %v1134 = vadd.f32 %v1045, %v1133
    %v1135 = vpop.f32.mrf.mxu0
    %v1136 = vadd.f32 %v1047, %v1135
    %1137 = vdwg.mxu0
    %1138 = vmatpush.bf16.msra.mxu0 %v878
    %1139 = vmatpush.bf16.msra.mxu0 %v876
    %1140 = vmatpush.bf16.msra.mxu0 %v874
    %1141 = vmatpush.bf16.msra.mxu0 %v872
    %1142 = vmatpush.bf16.msra.mxu0 %v870
    %1143 = vmatpush.bf16.msra.mxu0 %v868
    %1144 = vmatpush.bf16.msra.mxu0 %v866
    %1145 = vmatpush.bf16.msra.mxu0 %v864
    %1146 = vmatmul.bf16.gmra.mxu0 %v514
    %v1147 = vpop.f32.mrf.mxu0
    %v1148 = vadd.f32 %v1059, %v1147
    %v1149 = vpop.f32.mrf.mxu0
    %v1150 = vadd.f32 %v1061, %v1149
    %1151 = vmatmul.bf16.gmra.mxu0 %v518
    %v1152 = vpop.f32.mrf.mxu0
    %v1153 = vadd.f32 %v1064, %v1152
    %v1154 = vpop.f32.mrf.mxu0
    %v1155 = vadd.f32 %v1066, %v1154
    %1156 = vmatmul.bf16.gmra.mxu0 %v522
    %v1157 = vpop.f32.mrf.mxu0
    %v1158 = vadd.f32 %v1069, %v1157
    %v1159 = vpop.f32.mrf.mxu0
    %v1160 = vadd.f32 %v1071, %v1159
    %1161 = vmatmul.bf16.gmra.mxu0 %v526
    %v1162 = vpop.f32.mrf.mxu0
    %v1163 = vadd.f32 %v1074, %v1162
    %v1164 = vpop.f32.mrf.mxu0
    %v1165 = vadd.f32 %v1076, %v1164
    %1166 = vmatmul.bf16.gmra.mxu0 %v530
    %v1167 = vpop.f32.mrf.mxu0
    %v1168 = vadd.f32 %v1079, %v1167
    %v1169 = vpop.f32.mrf.mxu0
    %v1170 = vadd.f32 %v1081, %v1169
    %1171 = vmatmul.bf16.gmra.mxu0 %v534
    %v1172 = vpop.f32.mrf.mxu0
    %v1173 = vadd.f32 %v1084, %v1172
    %v1174 = vpop.f32.mrf.mxu0
    %v1175 = vadd.f32 %v1086, %v1174
    %1176 = vmatmul.bf16.gmra.mxu0 %v538
    %v1177 = vpop.f32.mrf.mxu0
    %v1178 = vadd.f32 %v1089, %v1177
    %v1179 = vpop.f32.mrf.mxu0
    %v1180 = vadd.f32 %v1091, %v1179
    %1181 = vmatmul.bf16.gmra.mxu0 %v542
    %v1182 = vpop.f32.mrf.mxu0
    %v1183 = vadd.f32 %v1094, %v1182
    %v1184 = vpop.f32.mrf.mxu0
    %v1185 = vadd.f32 %v1096, %v1184
    %1186 = vmatmul.bf16.gmra.mxu0 %v546
    %v1187 = vpop.f32.mrf.mxu0
    %v1188 = vadd.f32 %v1099, %v1187
    %v1189 = vpop.f32.mrf.mxu0
    %v1190 = vadd.f32 %v1101, %v1189
    %1191 = vmatmul.bf16.gmra.mxu0 %v550
    %v1192 = vpop.f32.mrf.mxu0
    %v1193 = vadd.f32 %v1104, %v1192
    %v1194 = vpop.f32.mrf.mxu0
    %v1195 = vadd.f32 %v1106, %v1194
    %1196 = vmatmul.bf16.gmra.mxu0 %v554
    %v1197 = vpop.f32.mrf.mxu0
    %v1198 = vadd.f32 %v1109, %v1197
    %v1199 = vpop.f32.mrf.mxu0
    %v1200 = vadd.f32 %v1111, %v1199
    %1201 = vmatmul.bf16.gmra.mxu0 %v558
    %v1202 = vpop.f32.mrf.mxu0
    %v1203 = vadd.f32 %v1114, %v1202
    %v1204 = vpop.f32.mrf.mxu0
    %v1205 = vadd.f32 %v1116, %v1204
    %1206 = vmatmul.bf16.gmra.mxu0 %v562
    %v1207 = vpop.f32.mrf.mxu0
    %v1208 = vadd.f32 %v1119, %v1207
    %v1209 = vpop.f32.mrf.mxu0
    %v1210 = vadd.f32 %v1121, %v1209
    %1211 = vmatmul.bf16.gmra.mxu0 %v566
    %v1212 = vpop.f32.mrf.mxu0
    %v1213 = vadd.f32 %v1124, %v1212
    %v1214 = vpop.f32.mrf.mxu0
    %v1215 = vadd.f32 %v1126, %v1214
    %1216 = vmatmul.bf16.gmra.mxu0 %v570
    %v1217 = vpop.f32.mrf.mxu0
    %v1218 = vadd.f32 %v1129, %v1217
    %v1219 = vpop.f32.mrf.mxu0
    %v1220 = vadd.f32 %v1131, %v1219
    %1221 = vmatmul.bf16.gmra.mxu0 %v574
    %v1222 = vpop.f32.mrf.mxu0
    %v1223 = vadd.f32 %v1134, %v1222
    %v1224 = vpop.f32.mrf.mxu0
    %v1225 = vadd.f32 %v1136, %v1224
    %1226 = vdwg.mxu0
    %1227 = vmatpush.bf16.msra.mxu0 %v894
    %1228 = vmatpush.bf16.msra.mxu0 %v892
    %1229 = vmatpush.bf16.msra.mxu0 %v890
    %1230 = vmatpush.bf16.msra.mxu0 %v888
    %1231 = vmatpush.bf16.msra.mxu0 %v886
    %1232 = vmatpush.bf16.msra.mxu0 %v884
    %1233 = vmatpush.bf16.msra.mxu0 %v882
    %1234 = vmatpush.bf16.msra.mxu0 %v880
    %1235 = vmatmul.bf16.gmra.mxu0 %v515
    %v1236 = vpop.f32.mrf.mxu0
    %v1237 = vadd.f32 %v1148, %v1236
    %v1238 = vpop.f32.mrf.mxu0
    %v1239 = vadd.f32 %v1150, %v1238
    %1240 = vmatmul.bf16.gmra.mxu0 %v519
    %v1241 = vpop.f32.mrf.mxu0
    %v1242 = vadd.f32 %v1153, %v1241
    %v1243 = vpop.f32.mrf.mxu0
    %v1244 = vadd.f32 %v1155, %v1243
    %1245 = vmatmul.bf16.gmra.mxu0 %v523
    %v1246 = vpop.f32.mrf.mxu0
    %v1247 = vadd.f32 %v1158, %v1246
    %v1248 = vpop.f32.mrf.mxu0
    %v1249 = vadd.f32 %v1160, %v1248
    %1250 = vmatmul.bf16.gmra.mxu0 %v527
    %v1251 = vpop.f32.mrf.mxu0
    %v1252 = vadd.f32 %v1163, %v1251
    %v1253 = vpop.f32.mrf.mxu0
    %v1254 = vadd.f32 %v1165, %v1253
    %1255 = vmatmul.bf16.gmra.mxu0 %v531
    %v1256 = vpop.f32.mrf.mxu0
    %v1257 = vadd.f32 %v1168, %v1256
    %v1258 = vpop.f32.mrf.mxu0
    %v1259 = vadd.f32 %v1170, %v1258
    %1260 = vmatmul.bf16.gmra.mxu0 %v535
    %v1261 = vpop.f32.mrf.mxu0
    %v1262 = vadd.f32 %v1173, %v1261
    %v1263 = vpop.f32.mrf.mxu0
    %v1264 = vadd.f32 %v1175, %v1263
    %1265 = vmatmul.bf16.gmra.mxu0 %v539
    %v1266 = vpop.f32.mrf.mxu0
    %v1267 = vadd.f32 %v1178, %v1266
    %v1268 = vpop.f32.mrf.mxu0
    %v1269 = vadd.f32 %v1180, %v1268
    %1270 = vmatmul.bf16.gmra.mxu0 %v543
    %v1271 = vpop.f32.mrf.mxu0
    %v1272 = vadd.f32 %v1183, %v1271
    %v1273 = vpop.f32.mrf.mxu0
    %v1274 = vadd.f32 %v1185, %v1273
    %1275 = vmatmul.bf16.gmra.mxu0 %v547
    %v1276 = vpop.f32.mrf.mxu0
    %v1277 = vadd.f32 %v1188, %v1276
    %v1278 = vpop.f32.mrf.mxu0
    %v1279 = vadd.f32 %v1190, %v1278
    %1280 = vmatmul.bf16.gmra.mxu0 %v551
    %v1281 = vpop.f32.mrf.mxu0
    %v1282 = vadd.f32 %v1193, %v1281
    %v1283 = vpop.f32.mrf.mxu0
    %v1284 = vadd.f32 %v1195, %v1283
    %1285 = vmatmul.bf16.gmra.mxu0 %v555
    %v1286 = vpop.f32.mrf.mxu0
    %v1287 = vadd.f32 %v1198, %v1286
    %v1288 = vpop.f32.mrf.mxu0
    %v1289 = vadd.f32 %v1200, %v1288
    %1290 = vmatmul.bf16.gmra.mxu0 %v559
    %v1291 = vpop.f32.mrf.mxu0
    %v1292 = vadd.f32 %v1203, %v1291
    %v1293 = vpop.f32.mrf.mxu0
    %v1294 = vadd.f32 %v1205, %v1293
    %1295 = vmatmul.bf16.gmra.mxu0 %v563
    %v1296 = vpop.f32.mrf.mxu0
    %v1297 = vadd.f32 %v1208, %v1296
    %v1298 = vpop.f32.mrf.mxu0
    %v1299 = vadd.f32 %v1210, %v1298
    %1300 = vmatmul.bf16.gmra.mxu0 %v567
    %v1301 = vpop.f32.mrf.mxu0
    %v1302 = vadd.f32 %v1213, %v1301
    %v1303 = vpop.f32.mrf.mxu0
    %v1304 = vadd.f32 %v1215, %v1303
    %1305 = vmatmul.bf16.gmra.mxu0 %v571
    %v1306 = vpop.f32.mrf.mxu0
    %v1307 = vadd.f32 %v1218, %v1306
    %v1308 = vpop.f32.mrf.mxu0
    %v1309 = vadd.f32 %v1220, %v1308
    %1310 = vmatmul.bf16.gmra.mxu0 %v575
    %v1311 = vpop.f32.mrf.mxu0
    %v1312 = vadd.f32 %v1223, %v1311
    %v1313 = vpop.f32.mrf.mxu0
    %v1314 = vadd.f32 %v1225, %v1313
    %1315 = vdwg.mxu0
    %1316 = vmatpush.bf16.msra.mxu0 %v847
    %1317 = vmatpush.bf16.msra.mxu0 %v845
    %1318 = vmatpush.bf16.msra.mxu0 %v843
    %1319 = vmatpush.bf16.msra.mxu0 %v841
    %1320 = vmatpush.bf16.msra.mxu0 %v839
    %1321 = vmatpush.bf16.msra.mxu0 %v837
    %1322 = vmatpush.bf16.msra.mxu0 %v835
    %1323 = vmatpush.bf16.msra.mxu0 %v833
    %1324 = vmatmul.bf16.gmra.mxu0 %v512
    %v1325 = vpop.f32.mrf.mxu0
    %v1326 = vadd.f32 0.0, %v1325
    %v1327 = vpop.f32.mrf.mxu0
    %v1328 = vadd.f32 0.0, %v1327
    %1329 = vmatmul.bf16.gmra.mxu0 %v516
    %v1330 = vpop.f32.mrf.mxu0
    %v1331 = vadd.f32 0.0, %v1330
    %v1332 = vpop.f32.mrf.mxu0
    %v1333 = vadd.f32 0.0, %v1332
    %1334 = vmatmul.bf16.gmra.mxu0 %v520
    %v1335 = vpop.f32.mrf.mxu0
    %v1336 = vadd.f32 0.0, %v1335
    %v1337 = vpop.f32.mrf.mxu0
    %v1338 = vadd.f32 0.0, %v1337
    %1339 = vmatmul.bf16.gmra.mxu0 %v524
    %v1340 = vpop.f32.mrf.mxu0
    %v1341 = vadd.f32 0.0, %v1340
    %v1342 = vpop.f32.mrf.mxu0
    %v1343 = vadd.f32 0.0, %v1342
    %1344 = vmatmul.bf16.gmra.mxu0 %v528
    %v1345 = vpop.f32.mrf.mxu0
    %v1346 = vadd.f32 0.0, %v1345
    %v1347 = vpop.f32.mrf.mxu0
    %v1348 = vadd.f32 0.0, %v1347
    %1349 = vmatmul.bf16.gmra.mxu0 %v532
    %v1350 = vpop.f32.mrf.mxu0
    %v1351 = vadd.f32 0.0, %v1350
    %v1352 = vpop.f32.mrf.mxu0
    %v1353 = vadd.f32 0.0, %v1352
    %1354 = vmatmul.bf16.gmra.mxu0 %v536
    %v1355 = vpop.f32.mrf.mxu0
    %v1356 = vadd.f32 0.0, %v1355
    %v1357 = vpop.f32.mrf.mxu0
    %v1358 = vadd.f32 0.0, %v1357
    %1359 = vmatmul.bf16.gmra.mxu0 %v540
    %v1360 = vpop.f32.mrf.mxu0
    %v1361 = vadd.f32 0.0, %v1360
    %v1362 = vpop.f32.mrf.mxu0
    %v1363 = vadd.f32 0.0, %v1362
    %1364 = vmatmul.bf16.gmra.mxu0 %v544
    %v1365 = vpop.f32.mrf.mxu0
    %v1366 = vadd.f32 0.0, %v1365
    %v1367 = vpop.f32.mrf.mxu0
    %v1368 = vadd.f32 0.0, %v1367
    %1369 = vmatmul.bf16.gmra.mxu0 %v548
    %v1370 = vpop.f32.mrf.mxu0
    %v1371 = vadd.f32 0.0, %v1370
    %v1372 = vpop.f32.mrf.mxu0
    %v1373 = vadd.f32 0.0, %v1372
    %1374 = vmatmul.bf16.gmra.mxu0 %v552
    %v1375 = vpop.f32.mrf.mxu0
    %v1376 = vadd.f32 0.0, %v1375
    %v1377 = vpop.f32.mrf.mxu0
    %v1378 = vadd.f32 0.0, %v1377
    %1379 = vmatmul.bf16.gmra.mxu0 %v556
    %v1380 = vpop.f32.mrf.mxu0
    %v1381 = vadd.f32 0.0, %v1380
    %v1382 = vpop.f32.mrf.mxu0
    %v1383 = vadd.f32 0.0, %v1382
    %1384 = vmatmul.bf16.gmra.mxu0 %v560
    %v1385 = vpop.f32.mrf.mxu0
    %v1386 = vadd.f32 0.0, %v1385
    %v1387 = vpop.f32.mrf.mxu0
    %v1388 = vadd.f32 0.0, %v1387
    %1389 = vmatmul.bf16.gmra.mxu0 %v564
    %v1390 = vpop.f32.mrf.mxu0
    %v1391 = vadd.f32 0.0, %v1390
    %v1392 = vpop.f32.mrf.mxu0
    %v1393 = vadd.f32 0.0, %v1392
    %1394 = vmatmul.bf16.gmra.mxu0 %v568
    %v1395 = vpop.f32.mrf.mxu0
    %v1396 = vadd.f32 0.0, %v1395
    %v1397 = vpop.f32.mrf.mxu0
    %v1398 = vadd.f32 0.0, %v1397
    %1399 = vmatmul.bf16.gmra.mxu0 %v572
    %v1400 = vpop.f32.mrf.mxu0
    %v1401 = vadd.f32 0.0, %v1400
    %v1402 = vpop.f32.mrf.mxu0
    %v1403 = vadd.f32 0.0, %v1402
    %1404 = vdwg.mxu0
    %1405 = vmatpush.bf16.msra.mxu0 %v863
    %1406 = vmatpush.bf16.msra.mxu0 %v861
    %1407 = vmatpush.bf16.msra.mxu0 %v859
    %1408 = vmatpush.bf16.msra.mxu0 %v857
    %1409 = vmatpush.bf16.msra.mxu0 %v855
    %1410 = vmatpush.bf16.msra.mxu0 %v853
    %1411 = vmatpush.bf16.msra.mxu0 %v851
    %1412 = vmatpush.bf16.msra.mxu0 %v849
    %1413 = vmatmul.bf16.gmra.mxu0 %v513
    %v1414 = vpop.f32.mrf.mxu0
    %v1415 = vadd.f32 %v1326, %v1414
    %v1416 = vpop.f32.mrf.mxu0
    %v1417 = vadd.f32 %v1328, %v1416
    %1418 = vmatmul.bf16.gmra.mxu0 %v517
    %v1419 = vpop.f32.mrf.mxu0
    %v1420 = vadd.f32 %v1331, %v1419
    %v1421 = vpop.f32.mrf.mxu0
    %v1422 = vadd.f32 %v1333, %v1421
    %1423 = vmatmul.bf16.gmra.mxu0 %v521
    %v1424 = vpop.f32.mrf.mxu0
    %v1425 = vadd.f32 %v1336, %v1424
    %v1426 = vpop.f32.mrf.mxu0
    %v1427 = vadd.f32 %v1338, %v1426
    %1428 = vmatmul.bf16.gmra.mxu0 %v525
    %v1429 = vpop.f32.mrf.mxu0
    %v1430 = vadd.f32 %v1341, %v1429
    %v1431 = vpop.f32.mrf.mxu0
    %v1432 = vadd.f32 %v1343, %v1431
    %1433 = vmatmul.bf16.gmra.mxu0 %v529
    %v1434 = vpop.f32.mrf.mxu0
    %v1435 = vadd.f32 %v1346, %v1434
    %v1436 = vpop.f32.mrf.mxu0
    %v1437 = vadd.f32 %v1348, %v1436
    %1438 = vmatmul.bf16.gmra.mxu0 %v533
    %v1439 = vpop.f32.mrf.mxu0
    %v1440 = vadd.f32 %v1351, %v1439
    %v1441 = vpop.f32.mrf.mxu0
    %v1442 = vadd.f32 %v1353, %v1441
    %1443 = vmatmul.bf16.gmra.mxu0 %v537
    %v1444 = vpop.f32.mrf.mxu0
    %v1445 = vadd.f32 %v1356, %v1444
    %v1446 = vpop.f32.mrf.mxu0
    %v1447 = vadd.f32 %v1358, %v1446
    %1448 = vmatmul.bf16.gmra.mxu0 %v541
    %v1449 = vpop.f32.mrf.mxu0
    %v1450 = vadd.f32 %v1361, %v1449
    %v1451 = vpop.f32.mrf.mxu0
    %v1452 = vadd.f32 %v1363, %v1451
    %1453 = vmatmul.bf16.gmra.mxu0 %v545
    %v1454 = vpop.f32.mrf.mxu0
    %v1455 = vadd.f32 %v1366, %v1454
    %v1456 = vpop.f32.mrf.mxu0
    %v1457 = vadd.f32 %v1368, %v1456
    %1458 = vmatmul.bf16.gmra.mxu0 %v549
    %v1459 = vpop.f32.mrf.mxu0
    %v1460 = vadd.f32 %v1371, %v1459
    %v1461 = vpop.f32.mrf.mxu0
    %v1462 = vadd.f32 %v1373, %v1461
    %1463 = vmatmul.bf16.gmra.mxu0 %v553
    %v1464 = vpop.f32.mrf.mxu0
    %v1465 = vadd.f32 %v1376, %v1464
    %v1466 = vpop.f32.mrf.mxu0
    %v1467 = vadd.f32 %v1378, %v1466
    %1468 = vmatmul.bf16.gmra.mxu0 %v557
    %v1469 = vpop.f32.mrf.mxu0
    %v1470 = vadd.f32 %v1381, %v1469
    %v1471 = vpop.f32.mrf.mxu0
    %v1472 = vadd.f32 %v1383, %v1471
    %1473 = vmatmul.bf16.gmra.mxu0 %v561
    %v1474 = vpop.f32.mrf.mxu0
    %v1475 = vadd.f32 %v1386, %v1474
    %v1476 = vpop.f32.mrf.mxu0
    %v1477 = vadd.f32 %v1388, %v1476
    %1478 = vmatmul.bf16.gmra.mxu0 %v565
    %v1479 = vpop.f32.mrf.mxu0
    %v1480 = vadd.f32 %v1391, %v1479
    %v1481 = vpop.f32.mrf.mxu0
    %v1482 = vadd.f32 %v1393, %v1481
    %1483 = vmatmul.bf16.gmra.mxu0 %v569
    %v1484 = vpop.f32.mrf.mxu0
    %v1485 = vadd.f32 %v1396, %v1484
    %v1486 = vpop.f32.mrf.mxu0
    %v1487 = vadd.f32 %v1398, %v1486
    %1488 = vmatmul.bf16.gmra.mxu0 %v573
    %v1489 = vpop.f32.mrf.mxu0
    %v1490 = vadd.f32 %v1401, %v1489
    %v1491 = vpop.f32.mrf.mxu0
    %v1492 = vadd.f32 %v1403, %v1491
    %1493 = vdwg.mxu0
    %1494 = vmatpush.bf16.msra.mxu0 %v879
    %1495 = vmatpush.bf16.msra.mxu0 %v877
    %1496 = vmatpush.bf16.msra.mxu0 %v875
    %1497 = vmatpush.bf16.msra.mxu0 %v873
    %1498 = vmatpush.bf16.msra.mxu0 %v871
    %1499 = vmatpush.bf16.msra.mxu0 %v869
    %1500 = vmatpush.bf16.msra.mxu0 %v867
    %1501 = vmatpush.bf16.msra.mxu0 %v865
    %1502 = vmatmul.bf16.gmra.mxu0 %v514
    %v1503 = vpop.f32.mrf.mxu0
    %v1504 = vadd.f32 %v1415, %v1503
    %v1505 = vpop.f32.mrf.mxu0
    %v1506 = vadd.f32 %v1417, %v1505
    %1507 = vmatmul.bf16.gmra.mxu0 %v518
    %v1508 = vpop.f32.mrf.mxu0
    %v1509 = vadd.f32 %v1420, %v1508
    %v1510 = vpop.f32.mrf.mxu0
    %v1511 = vadd.f32 %v1422, %v1510
    %1512 = vmatmul.bf16.gmra.mxu0 %v522
    %v1513 = vpop.f32.mrf.mxu0
    %v1514 = vadd.f32 %v1425, %v1513
    %v1515 = vpop.f32.mrf.mxu0
    %v1516 = vadd.f32 %v1427, %v1515
    %1517 = vmatmul.bf16.gmra.mxu0 %v526
    %v1518 = vpop.f32.mrf.mxu0
    %v1519 = vadd.f32 %v1430, %v1518
    %v1520 = vpop.f32.mrf.mxu0
    %v1521 = vadd.f32 %v1432, %v1520
    %1522 = vmatmul.bf16.gmra.mxu0 %v530
    %v1523 = vpop.f32.mrf.mxu0
    %v1524 = vadd.f32 %v1435, %v1523
    %v1525 = vpop.f32.mrf.mxu0
    %v1526 = vadd.f32 %v1437, %v1525
    %1527 = vmatmul.bf16.gmra.mxu0 %v534
    %v1528 = vpop.f32.mrf.mxu0
    %v1529 = vadd.f32 %v1440, %v1528
    %v1530 = vpop.f32.mrf.mxu0
    %v1531 = vadd.f32 %v1442, %v1530
    %1532 = vmatmul.bf16.gmra.mxu0 %v538
    %v1533 = vpop.f32.mrf.mxu0
    %v1534 = vadd.f32 %v1445, %v1533
    %v1535 = vpop.f32.mrf.mxu0
    %v1536 = vadd.f32 %v1447, %v1535
    %1537 = vmatmul.bf16.gmra.mxu0 %v542
    %v1538 = vpop.f32.mrf.mxu0
    %v1539 = vadd.f32 %v1450, %v1538
    %v1540 = vpop.f32.mrf.mxu0
    %v1541 = vadd.f32 %v1452, %v1540
    %1542 = vmatmul.bf16.gmra.mxu0 %v546
    %v1543 = vpop.f32.mrf.mxu0
    %v1544 = vadd.f32 %v1455, %v1543
    %v1545 = vpop.f32.mrf.mxu0
    %v1546 = vadd.f32 %v1457, %v1545
    %1547 = vmatmul.bf16.gmra.mxu0 %v550
    %v1548 = vpop.f32.mrf.mxu0
    %v1549 = vadd.f32 %v1460, %v1548
    %v1550 = vpop.f32.mrf.mxu0
    %v1551 = vadd.f32 %v1462, %v1550
    %1552 = vmatmul.bf16.gmra.mxu0 %v554
    %v1553 = vpop.f32.mrf.mxu0
    %v1554 = vadd.f32 %v1465, %v1553
    %v1555 = vpop.f32.mrf.mxu0
    %v1556 = vadd.f32 %v1467, %v1555
    %1557 = vmatmul.bf16.gmra.mxu0 %v558
    %v1558 = vpop.f32.mrf.mxu0
    %v1559 = vadd.f32 %v1470, %v1558
    %v1560 = vpop.f32.mrf.mxu0
    %v1561 = vadd.f32 %v1472, %v1560
    %1562 = vmatmul.bf16.gmra.mxu0 %v562
    %v1563 = vpop.f32.mrf.mxu0
    %v1564 = vadd.f32 %v1475, %v1563
    %v1565 = vpop.f32.mrf.mxu0
    %v1566 = vadd.f32 %v1477, %v1565
    %1567 = vmatmul.bf16.gmra.mxu0 %v566
    %v1568 = vpop.f32.mrf.mxu0
    %v1569 = vadd.f32 %v1480, %v1568
    %v1570 = vpop.f32.mrf.mxu0
    %v1571 = vadd.f32 %v1482, %v1570
    %1572 = vmatmul.bf16.gmra.mxu0 %v570
    %v1573 = vpop.f32.mrf.mxu0
    %v1574 = vadd.f32 %v1485, %v1573
    %v1575 = vpop.f32.mrf.mxu0
    %v1576 = vadd.f32 %v1487, %v1575
    %1577 = vmatmul.bf16.gmra.mxu0 %v574
    %v1578 = vpop.f32.mrf.mxu0
    %v1579 = vadd.f32 %v1490, %v1578
    %v1580 = vpop.f32.mrf.mxu0
    %v1581 = vadd.f32 %v1492, %v1580
    %1582 = vdwg.mxu0
    %1583 = vmatpush.bf16.msra.mxu0 %v895
    %1584 = vmatpush.bf16.msra.mxu0 %v893
    %1585 = vmatpush.bf16.msra.mxu0 %v891
    %1586 = vmatpush.bf16.msra.mxu0 %v889
    %1587 = vmatpush.bf16.msra.mxu0 %v887
    %1588 = vmatpush.bf16.msra.mxu0 %v885
    %1589 = vmatpush.bf16.msra.mxu0 %v883
    %1590 = vmatpush.bf16.msra.mxu0 %v881
    %1591 = vmatmul.bf16.gmra.mxu0 %v515
    %v1592 = vpop.f32.mrf.mxu0
    %v1593 = vadd.f32 %v1504, %v1592
    %v1594 = vpop.f32.mrf.mxu0
    %v1595 = vadd.f32 %v1506, %v1594
    %1596 = vmatmul.bf16.gmra.mxu0 %v519
    %v1597 = vpop.f32.mrf.mxu0
    %v1598 = vadd.f32 %v1509, %v1597
    %v1599 = vpop.f32.mrf.mxu0
    %v1600 = vadd.f32 %v1511, %v1599
    %1601 = vmatmul.bf16.gmra.mxu0 %v523
    %v1602 = vpop.f32.mrf.mxu0
    %v1603 = vadd.f32 %v1514, %v1602
    %v1604 = vpop.f32.mrf.mxu0
    %v1605 = vadd.f32 %v1516, %v1604
    %1606 = vmatmul.bf16.gmra.mxu0 %v527
    %v1607 = vpop.f32.mrf.mxu0
    %v1608 = vadd.f32 %v1519, %v1607
    %v1609 = vpop.f32.mrf.mxu0
    %v1610 = vadd.f32 %v1521, %v1609
    %1611 = vmatmul.bf16.gmra.mxu0 %v531
    %v1612 = vpop.f32.mrf.mxu0
    %v1613 = vadd.f32 %v1524, %v1612
    %v1614 = vpop.f32.mrf.mxu0
    %v1615 = vadd.f32 %v1526, %v1614
    %1616 = vmatmul.bf16.gmra.mxu0 %v535
    %v1617 = vpop.f32.mrf.mxu0
    %v1618 = vadd.f32 %v1529, %v1617
    %v1619 = vpop.f32.mrf.mxu0
    %v1620 = vadd.f32 %v1531, %v1619
    %1621 = vmatmul.bf16.gmra.mxu0 %v539
    %v1622 = vpop.f32.mrf.mxu0
    %v1623 = vadd.f32 %v1534, %v1622
    %v1624 = vpop.f32.mrf.mxu0
    %v1625 = vadd.f32 %v1536, %v1624
    %1626 = vmatmul.bf16.gmra.mxu0 %v543
    %v1627 = vpop.f32.mrf.mxu0
    %v1628 = vadd.f32 %v1539, %v1627
    %v1629 = vpop.f32.mrf.mxu0
    %v1630 = vadd.f32 %v1541, %v1629
    %1631 = vmatmul.bf16.gmra.mxu0 %v547
    %v1632 = vpop.f32.mrf.mxu0
    %v1633 = vadd.f32 %v1544, %v1632
    %v1634 = vpop.f32.mrf.mxu0
    %v1635 = vadd.f32 %v1546, %v1634
    %1636 = vmatmul.bf16.gmra.mxu0 %v551
    %v1637 = vpop.f32.mrf.mxu0
    %v1638 = vadd.f32 %v1549, %v1637
    %v1639 = vpop.f32.mrf.mxu0
    %v1640 = vadd.f32 %v1551, %v1639
    %1641 = vmatmul.bf16.gmra.mxu0 %v555
    %v1642 = vpop.f32.mrf.mxu0
    %v1643 = vadd.f32 %v1554, %v1642
    %v1644 = vpop.f32.mrf.mxu0
    %v1645 = vadd.f32 %v1556, %v1644
    %1646 = vmatmul.bf16.gmra.mxu0 %v559
    %v1647 = vpop.f32.mrf.mxu0
    %v1648 = vadd.f32 %v1559, %v1647
    %v1649 = vpop.f32.mrf.mxu0
    %v1650 = vadd.f32 %v1561, %v1649
    %1651 = vmatmul.bf16.gmra.mxu0 %v563
    %v1652 = vpop.f32.mrf.mxu0
    %v1653 = vadd.f32 %v1564, %v1652
    %v1654 = vpop.f32.mrf.mxu0
    %v1655 = vadd.f32 %v1566, %v1654
    %1656 = vmatmul.bf16.gmra.mxu0 %v567
    %v1657 = vpop.f32.mrf.mxu0
    %v1658 = vadd.f32 %v1569, %v1657
    %v1659 = vpop.f32.mrf.mxu0
    %v1660 = vadd.f32 %v1571, %v1659
    %1661 = vmatmul.bf16.gmra.mxu0 %v571
    %v1662 = vpop.f32.mrf.mxu0
    %v1663 = vadd.f32 %v1574, %v1662
    %v1664 = vpop.f32.mrf.mxu0
    %v1665 = vadd.f32 %v1576, %v1664
    %1666 = vmatmul.bf16.gmra.mxu0 %v575
    %v1667 = vpop.f32.mrf.mxu0
    %v1668 = vadd.f32 %v1579, %v1667
    %v1669 = vpop.f32.mrf.mxu0
    %v1670 = vadd.f32 %v1581, %v1669
    %1671 = vdwg.mxu0
    %v1672 = vadd.f32 %v128, %v1237
    %v1673 = vadd.f32 %v129, %v1593
    %v1674 = vadd.f32 %v130, %v1239
    %v1675 = vadd.f32 %v131, %v1595
    %v1676 = vadd.f32 %v132, %v1242
    %v1677 = vadd.f32 %v133, %v1598
    %v1678 = vadd.f32 %v134, %v1244
    %v1679 = vadd.f32 %v135, %v1600
    %v1680 = vadd.f32 %v136, %v1247
    %v1681 = vadd.f32 %v137, %v1603
    %v1682 = vadd.f32 %v138, %v1249
    %v1683 = vadd.f32 %v139, %v1605
    %v1684 = vadd.f32 %v140, %v1252
    %v1685 = vadd.f32 %v141, %v1608
    %v1686 = vadd.f32 %v142, %v1254
    %v1687 = vadd.f32 %v143, %v1610
    %v1688 = vadd.f32 %v144, %v1257
    %v1689 = vadd.f32 %v145, %v1613
    %v1690 = vadd.f32 %v146, %v1259
    %v1691 = vadd.f32 %v147, %v1615
    %v1692 = vadd.f32 %v148, %v1262
    %v1693 = vadd.f32 %v149, %v1618
    %v1694 = vadd.f32 %v150, %v1264
    %v1695 = vadd.f32 %v151, %v1620
    %v1696 = vadd.f32 %v152, %v1267
    %v1697 = vadd.f32 %v153, %v1623
    %v1698 = vadd.f32 %v154, %v1269
    %v1699 = vadd.f32 %v155, %v1625
    %v1700 = vadd.f32 %v156, %v1272
    %v1701 = vadd.f32 %v157, %v1628
    %v1702 = vadd.f32 %v158, %v1274
    %v1703 = vadd.f32 %v159, %v1630
    %v1704 = vadd.f32 %v160, %v1277
    %v1705 = vadd.f32 %v161, %v1633
    %v1706 = vadd.f32 %v162, %v1279
    %v1707 = vadd.f32 %v163, %v1635
    %v1708 = vadd.f32 %v164, %v1282
    %v1709 = vadd.f32 %v165, %v1638
    %v1710 = vadd.f32 %v166, %v1284
    %v1711 = vadd.f32 %v167, %v1640
    %v1712 = vadd.f32 %v168, %v1287
    %v1713 = vadd.f32 %v169, %v1643
    %v1714 = vadd.f32 %v170, %v1289
    %v1715 = vadd.f32 %v171, %v1645
    %v1716 = vadd.f32 %v172, %v1292
    %v1717 = vadd.f32 %v173, %v1648
    %v1718 = vadd.f32 %v174, %v1294
    %v1719 = vadd.f32 %v175, %v1650
    %v1720 = vadd.f32 %v176, %v1297
    %v1721 = vadd.f32 %v177, %v1653
    %v1722 = vadd.f32 %v178, %v1299
    %v1723 = vadd.f32 %v179, %v1655
    %v1724 = vadd.f32 %v180, %v1302
    %v1725 = vadd.f32 %v181, %v1658
    %v1726 = vadd.f32 %v182, %v1304
    %v1727 = vadd.f32 %v183, %v1660
    %v1728 = vadd.f32 %v184, %v1307
    %v1729 = vadd.f32 %v185, %v1663
    %v1730 = vadd.f32 %v186, %v1309
    %v1731 = vadd.f32 %v187, %v1665
    %v1732 = vadd.f32 %v188, %v1312
    %v1733 = vadd.f32 %v189, %v1668
    %v1734 = vadd.f32 %v190, %v1314
    %v1735 = vadd.f32 %v191, %v1670
    %1736 = vst [vmem:[#allocation2] sm:$0xff] %v1672
    %1737 = vst [vmem:[#allocation2 + $0x8] sm:$0xff] %v1673
    %1738 = vst [vmem:[#allocation2 + $0x10] sm:$0xff] %v1674
    %1739 = vst [vmem:[#allocation2 + $0x18] sm:$0xff] %v1675
    %1740 = vst [vmem:[#allocation2 + $0x20] sm:$0xff] %v1676
    %1741 = vst [vmem:[#allocation2 + $0x28] sm:$0xff] %v1677
    %1742 = vst [vmem:[#allocation2 + $0x30] sm:$0xff] %v1678
    %1743 = vst [vmem:[#allocation2 + $0x38] sm:$0xff] %v1679
    %1744 = vst [vmem:[#allocation2 + $0x40] sm:$0xff] %v1680
    %1745 = vst [vmem:[#allocation2 + $0x48] sm:$0xff] %v1681
    %1746 = vst [vmem:[#allocation2 + $0x50] sm:$0xff] %v1682
    %1747 = vst [vmem:[#allocation2 + $0x58] sm:$0xff] %v1683
    %1748 = vst [vmem:[#allocation2 + $0x60] sm:$0xff] %v1684
    %1749 = vst [vmem:[#allocation2 + $0x68] sm:$0xff] %v1685
    %1750 = vst [vmem:[#allocation2 + $0x70] sm:$0xff] %v1686
    %1751 = vst [vmem:[#allocation2 + $0x78] sm:$0xff] %v1687
    %1752 = vst [vmem:[#allocation2 + $0x80] sm:$0xff] %v1688
    %1753 = vst [vmem:[#allocation2 + $0x88] sm:$0xff] %v1689
    %1754 = vst [vmem:[#allocation2 + $0x90] sm:$0xff] %v1690
    %1755 = vst [vmem:[#allocation2 + $0x98] sm:$0xff] %v1691
    %1756 = vst [vmem:[#allocation2 + $0xa0] sm:$0xff] %v1692
    %1757 = vst [vmem:[#allocation2 + $0xa8] sm:$0xff] %v1693
    %1758 = vst [vmem:[#allocation2 + $0xb0] sm:$0xff] %v1694
    %1759 = vst [vmem:[#allocation2 + $0xb8] sm:$0xff] %v1695
    %1760 = vst [vmem:[#allocation2 + $0xc0] sm:$0xff] %v1696
    %1761 = vst [vmem:[#allocation2 + $0xc8] sm:$0xff] %v1697
    %1762 = vst [vmem:[#allocation2 + $0xd0] sm:$0xff] %v1698
    %1763 = vst [vmem:[#allocation2 + $0xd8] sm:$0xff] %v1699
    %1764 = vst [vmem:[#allocation2 + $0xe0] sm:$0xff] %v1700
    %1765 = vst [vmem:[#allocation2 + $0xe8] sm:$0xff] %v1701
    %1766 = vst [vmem:[#allocation2 + $0xf0] sm:$0xff] %v1702
    %1767 = vst [vmem:[#allocation2 + $0xf8] sm:$0xff] %v1703
    %1768 = vst [vmem:[#allocation2 + $0x100] sm:$0xff] %v1704
    %1769 = vst [vmem:[#allocation2 + $0x108] sm:$0xff] %v1705
    %1770 = vst [vmem:[#allocation2 + $0x110] sm:$0xff] %v1706
    %1771 = vst [vmem:[#allocation2 + $0x118] sm:$0xff] %v1707
    %1772 = vst [vmem:[#allocation2 + $0x120] sm:$0xff] %v1708
    %1773 = vst [vmem:[#allocation2 + $0x128] sm:$0xff] %v1709
    %1774 = vst [vmem:[#allocation2 + $0x130] sm:$0xff] %v1710
    %1775 = vst [vmem:[#allocation2 + $0x138] sm:$0xff] %v1711
    %1776 = vst [vmem:[#allocation2 + $0x140] sm:$0xff] %v1712
    %1777 = vst [vmem:[#allocation2 + $0x148] sm:$0xff] %v1713
    %1778 = vst [vmem:[#allocation2 + $0x150] sm:$0xff] %v1714
    %1779 = vst [vmem:[#allocation2 + $0x158] sm:$0xff] %v1715
    %1780 = vst [vmem:[#allocation2 + $0x160] sm:$0xff] %v1716
    %1781 = vst [vmem:[#allocation2 + $0x168] sm:$0xff] %v1717
    %1782 = vst [vmem:[#allocation2 + $0x170] sm:$0xff] %v1718
    %1783 = vst [vmem:[#allocation2 + $0x178] sm:$0xff] %v1719
    %1784 = vst [vmem:[#allocation2 + $0x180] sm:$0xff] %v1720
    %1785 = vst [vmem:[#allocation2 + $0x188] sm:$0xff] %v1721
    %1786 = vst [vmem:[#allocation2 + $0x190] sm:$0xff] %v1722
    %1787 = vst [vmem:[#allocation2 + $0x198] sm:$0xff] %v1723
    %1788 = vst [vmem:[#allocation2 + $0x1a0] sm:$0xff] %v1724
    %1789 = vst [vmem:[#allocation2 + $0x1a8] sm:$0xff] %v1725
    %1790 = vst [vmem:[#allocation2 + $0x1b0] sm:$0xff] %v1726
    %1791 = vst [vmem:[#allocation2 + $0x1b8] sm:$0xff] %v1727
    %1792 = vst [vmem:[#allocation2 + $0x1c0] sm:$0xff] %v1728
    %1793 = vst [vmem:[#allocation2 + $0x1c8] sm:$0xff] %v1729
    %1794 = vst [vmem:[#allocation2 + $0x1d0] sm:$0xff] %v1730
    %1795 = vst [vmem:[#allocation2 + $0x1d8] sm:$0xff] %v1731
    %1796 = vst [vmem:[#allocation2 + $0x1e0] sm:$0xff] %v1732
    %1797 = vst [vmem:[#allocation2 + $0x1e8] sm:$0xff] %v1733
    %1798 = vst [vmem:[#allocation2 + $0x1f0] sm:$0xff] %v1734
    %1799 = vst [vmem:[#allocation2 + $0x1f8] sm:$0xff] %v1735
    // Predicated region
    $region30: #{tpu_custom_call.1} parent=1 // pred_check
      %p1800 = pneg %p60
    $region31: #{tpu_custom_call.1} parent=1 // pred_check_branch
      %1802 = sbr.rel (%p1800) target = $region33
    $region32: #{tpu_custom_call.1} parent=1 // pred_region
      %v1803 = vld [vmem:[#allocation2] sm:$0xff]
      %v1804 = vld [vmem:[#allocation2 + $0x8] sm:$0xff]
      %v1805 = vld [vmem:[#allocation2 + $0x10] sm:$0xff]
      %v1806 = vld [vmem:[#allocation2 + $0x18] sm:$0xff]
      %v1807 = vld [vmem:[#allocation2 + $0x20] sm:$0xff]
      %v1808 = vld [vmem:[#allocation2 + $0x28] sm:$0xff]
      %v1809 = vld [vmem:[#allocation2 + $0x30] sm:$0xff]
      %v1810 = vld [vmem:[#allocation2 + $0x38] sm:$0xff]
      %v1811 = vld [vmem:[#allocation2 + $0x40] sm:$0xff]
      %v1812 = vld [vmem:[#allocation2 + $0x48] sm:$0xff]
      %v1813 = vld [vmem:[#allocation2 + $0x50] sm:$0xff]
      %v1814 = vld [vmem:[#allocation2 + $0x58] sm:$0xff]
      %v1815 = vld [vmem:[#allocation2 + $0x60] sm:$0xff]
      %v1816 = vld [vmem:[#allocation2 + $0x68] sm:$0xff]
      %v1817 = vld [vmem:[#allocation2 + $0x70] sm:$0xff]
      %v1818 = vld [vmem:[#allocation2 + $0x78] sm:$0xff]
      %v1819 = vld [vmem:[#allocation2 + $0x80] sm:$0xff]
      %v1820 = vld [vmem:[#allocation2 + $0x88] sm:$0xff]
      %v1821 = vld [vmem:[#allocation2 + $0x90] sm:$0xff]
      %v1822 = vld [vmem:[#allocation2 + $0x98] sm:$0xff]
      %v1823 = vld [vmem:[#allocation2 + $0xa0] sm:$0xff]
      %v1824 = vld [vmem:[#allocation2 + $0xa8] sm:$0xff]
      %v1825 = vld [vmem:[#allocation2 + $0xb0] sm:$0xff]
      %v1826 = vld [vmem:[#allocation2 + $0xb8] sm:$0xff]
      %v1827 = vld [vmem:[#allocation2 + $0xc0] sm:$0xff]
      %v1828 = vld [vmem:[#allocation2 + $0xc8] sm:$0xff]
      %v1829 = vld [vmem:[#allocation2 + $0xd0] sm:$0xff]
      %v1830 = vld [vmem:[#allocation2 + $0xd8] sm:$0xff]
      %v1831 = vld [vmem:[#allocation2 + $0xe0] sm:$0xff]
      %v1832 = vld [vmem:[#allocation2 + $0xe8] sm:$0xff]
      %v1833 = vld [vmem:[#allocation2 + $0xf0] sm:$0xff]
      %v1834 = vld [vmem:[#allocation2 + $0xf8] sm:$0xff]
      %v1835 = vld [vmem:[#allocation2 + $0x100] sm:$0xff]
      %v1836 = vld [vmem:[#allocation2 + $0x108] sm:$0xff]
      %v1837 = vld [vmem:[#allocation2 + $0x110] sm:$0xff]
      %v1838 = vld [vmem:[#allocation2 + $0x118] sm:$0xff]
      %v1839 = vld [vmem:[#allocation2 + $0x120] sm:$0xff]
      %v1840 = vld [vmem:[#allocation2 + $0x128] sm:$0xff]
      %v1841 = vld [vmem:[#allocation2 + $0x130] sm:$0xff]
      %v1842 = vld [vmem:[#allocation2 + $0x138] sm:$0xff]
      %v1843 = vld [vmem:[#allocation2 + $0x140] sm:$0xff]
      %v1844 = vld [vmem:[#allocation2 + $0x148] sm:$0xff]
      %v1845 = vld [vmem:[#allocation2 + $0x150] sm:$0xff]
      %v1846 = vld [vmem:[#allocation2 + $0x158] sm:$0xff]
      %v1847 = vld [vmem:[#allocation2 + $0x160] sm:$0xff]
      %v1848 = vld [vmem:[#allocation2 + $0x168] sm:$0xff]
      %v1849 = vld [vmem:[#allocation2 + $0x170] sm:$0xff]
      %v1850 = vld [vmem:[#allocation2 + $0x178] sm:$0xff]
      %v1851 = vld [vmem:[#allocation2 + $0x180] sm:$0xff]
      %v1852 = vld [vmem:[#allocation2 + $0x188] sm:$0xff]
      %v1853 = vld [vmem:[#allocation2 + $0x190] sm:$0xff]
      %v1854 = vld [vmem:[#allocation2 + $0x198] sm:$0xff]
      %v1855 = vld [vmem:[#allocation2 + $0x1a0] sm:$0xff]
      %v1856 = vld [vmem:[#allocation2 + $0x1a8] sm:$0xff]
      %v1857 = vld [vmem:[#allocation2 + $0x1b0] sm:$0xff]
      %v1858 = vld [vmem:[#allocation2 + $0x1b8] sm:$0xff]
      %v1859 = vld [vmem:[#allocation2 + $0x1c0] sm:$0xff]
      %v1860 = vld [vmem:[#allocation2 + $0x1c8] sm:$0xff]
      %v1861 = vld [vmem:[#allocation2 + $0x1d0] sm:$0xff]
      %v1862 = vld [vmem:[#allocation2 + $0x1d8] sm:$0xff]
      %v1863 = vld [vmem:[#allocation2 + $0x1e0] sm:$0xff]
      %v1864 = vld [vmem:[#allocation2 + $0x1e8] sm:$0xff]
      %v1865 = vld [vmem:[#allocation2 + $0x1f0] sm:$0xff]
      %v1866 = vld [vmem:[#allocation2 + $0x1f8] sm:$0xff]
      %v1867 = vld [vmem:[#allocation8] sm:$0x3]
      %v1869 = vperm.slane %v1867, 0
      %v1870 = vperm.slane %v1867, 1
      %v1873 = vadd.f32 %v1803, %v1869
      %v1874 = vadd.f32 %v1804, %v1870
      %v1875 = vadd.f32 %v1805, %v1869
      %v1876 = vadd.f32 %v1806, %v1870
      %v1877 = vadd.f32 %v1807, %v1869
      %v1878 = vadd.f32 %v1808, %v1870
      %v1879 = vadd.f32 %v1809, %v1869
      %v1880 = vadd.f32 %v1810, %v1870
      %v1881 = vadd.f32 %v1811, %v1869
      %v1882 = vadd.f32 %v1812, %v1870
      %v1883 = vadd.f32 %v1813, %v1869
      %v1884 = vadd.f32 %v1814, %v1870
      %v1885 = vadd.f32 %v1815, %v1869
      %v1886 = vadd.f32 %v1816, %v1870
      %v1887 = vadd.f32 %v1817, %v1869
      %v1888 = vadd.f32 %v1818, %v1870
      %v1889 = vadd.f32 %v1819, %v1869
      %v1890 = vadd.f32 %v1820, %v1870
      %v1891 = vadd.f32 %v1821, %v1869
      %v1892 = vadd.f32 %v1822, %v1870
      %v1893 = vadd.f32 %v1823, %v1869
      %v1894 = vadd.f32 %v1824, %v1870
      %v1895 = vadd.f32 %v1825, %v1869
      %v1896 = vadd.f32 %v1826, %v1870
      %v1897 = vadd.f32 %v1827, %v1869
      %v1898 = vadd.f32 %v1828, %v1870
      %v1899 = vadd.f32 %v1829, %v1869
      %v1900 = vadd.f32 %v1830, %v1870
      %v1901 = vadd.f32 %v1831, %v1869
      %v1902 = vadd.f32 %v1832, %v1870
      %v1903 = vadd.f32 %v1833, %v1869
      %v1904 = vadd.f32 %v1834, %v1870
      %v1905 = vadd.f32 %v1835, %v1869
      %v1906 = vadd.f32 %v1836, %v1870
      %v1907 = vadd.f32 %v1837, %v1869
      %v1908 = vadd.f32 %v1838, %v1870
      %v1909 = vadd.f32 %v1839, %v1869
      %v1910 = vadd.f32 %v1840, %v1870
      %v1911 = vadd.f32 %v1841, %v1869
      %v1912 = vadd.f32 %v1842, %v1870
      %v1913 = vadd.f32 %v1843, %v1869
      %v1914 = vadd.f32 %v1844, %v1870
      %v1915 = vadd.f32 %v1845, %v1869
      %v1916 = vadd.f32 %v1846, %v1870
      %v1917 = vadd.f32 %v1847, %v1869
      %v1918 = vadd.f32 %v1848, %v1870
      %v1919 = vadd.f32 %v1849, %v1869
      %v1920 = vadd.f32 %v1850, %v1870
      %v1921 = vadd.f32 %v1851, %v1869
      %v1922 = vadd.f32 %v1852, %v1870
      %v1923 = vadd.f32 %v1853, %v1869
      %v1924 = vadd.f32 %v1854, %v1870
      %v1925 = vadd.f32 %v1855, %v1869
      %v1926 = vadd.f32 %v1856, %v1870
      %v1927 = vadd.f32 %v1857, %v1869
      %v1928 = vadd.f32 %v1858, %v1870
      %v1929 = vadd.f32 %v1859, %v1869
      %v1930 = vadd.f32 %v1860, %v1870
      %v1931 = vadd.f32 %v1861, %v1869
      %v1932 = vadd.f32 %v1862, %v1870
      %v1933 = vadd.f32 %v1863, %v1869
      %v1934 = vadd.f32 %v1864, %v1870
      %v1935 = vadd.f32 %v1865, %v1869
      %v1936 = vadd.f32 %v1866, %v1870
      %v1937 = vmul.f32 %v1873, 0.5
      %v1938 = vmul.f32 %v1874, 0.5
      %v1939 = vmul.f32 %v1875, 0.5
      %v1940 = vmul.f32 %v1876, 0.5
      %v1941 = vmul.f32 %v1877, 0.5
      %v1942 = vmul.f32 %v1878, 0.5
      %v1943 = vmul.f32 %v1879, 0.5
      %v1944 = vmul.f32 %v1880, 0.5
      %v1945 = vmul.f32 %v1881, 0.5
      %v1946 = vmul.f32 %v1882, 0.5
      %v1947 = vmul.f32 %v1883, 0.5
      %v1948 = vmul.f32 %v1884, 0.5
      %v1949 = vmul.f32 %v1885, 0.5
      %v1950 = vmul.f32 %v1886, 0.5
      %v1951 = vmul.f32 %v1887, 0.5
      %v1952 = vmul.f32 %v1888, 0.5
      %v1953 = vmul.f32 %v1889, 0.5
      %v1954 = vmul.f32 %v1890, 0.5
      %v1955 = vmul.f32 %v1891, 0.5
      %v1956 = vmul.f32 %v1892, 0.5
      %v1957 = vmul.f32 %v1893, 0.5
      %v1958 = vmul.f32 %v1894, 0.5
      %v1959 = vmul.f32 %v1895, 0.5
      %v1960 = vmul.f32 %v1896, 0.5
      %v1961 = vmul.f32 %v1897, 0.5
      %v1962 = vmul.f32 %v1898, 0.5
      %v1963 = vmul.f32 %v1899, 0.5
      %v1964 = vmul.f32 %v1900, 0.5
      %v1965 = vmul.f32 %v1901, 0.5
      %v1966 = vmul.f32 %v1902, 0.5
      %v1967 = vmul.f32 %v1903, 0.5
      %v1968 = vmul.f32 %v1904, 0.5
      %v1969 = vmul.f32 %v1905, 0.5
      %v1970 = vmul.f32 %v1906, 0.5
      %v1971 = vmul.f32 %v1907, 0.5
      %v1972 = vmul.f32 %v1908, 0.5
      %v1973 = vmul.f32 %v1909, 0.5
      %v1974 = vmul.f32 %v1910, 0.5
      %v1975 = vmul.f32 %v1911, 0.5
      %v1976 = vmul.f32 %v1912, 0.5
      %v1977 = vmul.f32 %v1913, 0.5
      %v1978 = vmul.f32 %v1914, 0.5
      %v1979 = vmul.f32 %v1915, 0.5
      %v1980 = vmul.f32 %v1916, 0.5
      %v1981 = vmul.f32 %v1917, 0.5
      %v1982 = vmul.f32 %v1918, 0.5
      %v1983 = vmul.f32 %v1919, 0.5
      %v1984 = vmul.f32 %v1920, 0.5
      %v1985 = vmul.f32 %v1921, 0.5
      %v1986 = vmul.f32 %v1922, 0.5
      %v1987 = vmul.f32 %v1923, 0.5
      %v1988 = vmul.f32 %v1924, 0.5
      %v1989 = vmul.f32 %v1925, 0.5
      %v1990 = vmul.f32 %v1926, 0.5
      %v1991 = vmul.f32 %v1927, 0.5
      %v1992 = vmul.f32 %v1928, 0.5
      %v1993 = vmul.f32 %v1929, 0.5
      %v1994 = vmul.f32 %v1930, 0.5
      %v1995 = vmul.f32 %v1931, 0.5
      %v1996 = vmul.f32 %v1932, 0.5
      %v1997 = vmul.f32 %v1933, 0.5
      %v1998 = vmul.f32 %v1934, 0.5
      %v1999 = vmul.f32 %v1935, 0.5
      %v2000 = vmul.f32 %v1936, 0.5
      %v2001 = vmul.f32 %v1873, 0.044715
      %v2002 = vmul.f32 %v1874, 0.044715
      %v2003 = vmul.f32 %v1875, 0.044715
      %v2004 = vmul.f32 %v1876, 0.044715
      %v2005 = vmul.f32 %v1877, 0.044715
      %v2006 = vmul.f32 %v1878, 0.044715
      %v2007 = vmul.f32 %v1879, 0.044715
      %v2008 = vmul.f32 %v1880, 0.044715
      %v2009 = vmul.f32 %v1881, 0.044715
      %v2010 = vmul.f32 %v1882, 0.044715
      %v2011 = vmul.f32 %v1883, 0.044715
      %v2012 = vmul.f32 %v1884, 0.044715
      %v2013 = vmul.f32 %v1885, 0.044715
      %v2014 = vmul.f32 %v1886, 0.044715
      %v2015 = vmul.f32 %v1887, 0.044715
      %v2016 = vmul.f32 %v1888, 0.044715
      %v2017 = vmul.f32 %v1889, 0.044715
      %v2018 = vmul.f32 %v1890, 0.044715
      %v2019 = vmul.f32 %v1891, 0.044715
      %v2020 = vmul.f32 %v1892, 0.044715
      %v2021 = vmul.f32 %v1893, 0.044715
      %v2022 = vmul.f32 %v1894, 0.044715
      %v2023 = vmul.f32 %v1895, 0.044715
      %v2024 = vmul.f32 %v1896, 0.044715
      %v2025 = vmul.f32 %v1897, 0.044715
      %v2026 = vmul.f32 %v1898, 0.044715
      %v2027 = vmul.f32 %v1899, 0.044715
      %v2028 = vmul.f32 %v1900, 0.044715
      %v2029 = vmul.f32 %v1901, 0.044715
      %v2030 = vmul.f32 %v1902, 0.044715
      %v2031 = vmul.f32 %v1903, 0.044715
      %v2032 = vmul.f32 %v1904, 0.044715
      %v2033 = vmul.f32 %v1905, 0.044715
      %v2034 = vmul.f32 %v1906, 0.044715
      %v2035 = vmul.f32 %v1907, 0.044715
      %v2036 = vmul.f32 %v1908, 0.044715
      %v2037 = vmul.f32 %v1909, 0.044715
      %v2038 = vmul.f32 %v1910, 0.044715
      %v2039 = vmul.f32 %v1911, 0.044715
      %v2040 = vmul.f32 %v1912, 0.044715
      %v2041 = vmul.f32 %v1913, 0.044715
      %v2042 = vmul.f32 %v1914, 0.044715
      %v2043 = vmul.f32 %v1915, 0.044715
      %v2044 = vmul.f32 %v1916, 0.044715
      %v2045 = vmul.f32 %v1917, 0.044715
      %v2046 = vmul.f32 %v1918, 0.044715
      %v2047 = vmul.f32 %v1919, 0.044715
      %v2048 = vmul.f32 %v1920, 0.044715
      %v2049 = vmul.f32 %v1921, 0.044715
      %v2050 = vmul.f32 %v1922, 0.044715
      %v2051 = vmul.f32 %v1923, 0.044715
      %v2052 = vmul.f32 %v1924, 0.044715
      %v2053 = vmul.f32 %v1925, 0.044715
      %v2054 = vmul.f32 %v1926, 0.044715
      %v2055 = vmul.f32 %v1927, 0.044715
      %v2056 = vmul.f32 %v1928, 0.044715
      %v2057 = vmul.f32 %v1929, 0.044715
      %v2058 = vmul.f32 %v1930, 0.044715
      %v2059 = vmul.f32 %v1931, 0.044715
      %v2060 = vmul.f32 %v1932, 0.044715
      %v2061 = vmul.f32 %v1933, 0.044715
      %v2062 = vmul.f32 %v1934, 0.044715
      %v2063 = vmul.f32 %v1935, 0.044715
      %v2064 = vmul.f32 %v1936, 0.044715
      %v2065 = vmul.f32 %v2001, %v1873
      %v2066 = vmul.f32 %v2002, %v1874
      %v2067 = vmul.f32 %v2003, %v1875
      %v2068 = vmul.f32 %v2004, %v1876
      %v2069 = vmul.f32 %v2005, %v1877
      %v2070 = vmul.f32 %v2006, %v1878
      %v2071 = vmul.f32 %v2007, %v1879
      %v2072 = vmul.f32 %v2008, %v1880
      %v2073 = vmul.f32 %v2009, %v1881
      %v2074 = vmul.f32 %v2010, %v1882
      %v2075 = vmul.f32 %v2011, %v1883
      %v2076 = vmul.f32 %v2012, %v1884
      %v2077 = vmul.f32 %v2013, %v1885
      %v2078 = vmul.f32 %v2014, %v1886
      %v2079 = vmul.f32 %v2015, %v1887
      %v2080 = vmul.f32 %v2016, %v1888
      %v2081 = vmul.f32 %v2017, %v1889
      %v2082 = vmul.f32 %v2018, %v1890
      %v2083 = vmul.f32 %v2019, %v1891
      %v2084 = vmul.f32 %v2020, %v1892
      %v2085 = vmul.f32 %v2021, %v1893
      %v2086 = vmul.f32 %v2022, %v1894
      %v2087 = vmul.f32 %v2023, %v1895
      %v2088 = vmul.f32 %v2024, %v1896
      %v2089 = vmul.f32 %v2025, %v1897
      %v2090 = vmul.f32 %v2026, %v1898
      %v2091 = vmul.f32 %v2027, %v1899
      %v2092 = vmul.f32 %v2028, %v1900
      %v2093 = vmul.f32 %v2029, %v1901
      %v2094 = vmul.f32 %v2030, %v1902
      %v2095 = vmul.f32 %v2031, %v1903
      %v2096 = vmul.f32 %v2032, %v1904
      %v2097 = vmul.f32 %v2033, %v1905
      %v2098 = vmul.f32 %v2034, %v1906
      %v2099 = vmul.f32 %v2035, %v1907
      %v2100 = vmul.f32 %v2036, %v1908
      %v2101 = vmul.f32 %v2037, %v1909
      %v2102 = vmul.f32 %v2038, %v1910
      %v2103 = vmul.f32 %v2039, %v1911
      %v2104 = vmul.f32 %v2040, %v1912
      %v2105 = vmul.f32 %v2041, %v1913
      %v2106 = vmul.f32 %v2042, %v1914
      %v2107 = vmul.f32 %v2043, %v1915
      %v2108 = vmul.f32 %v2044, %v1916
      %v2109 = vmul.f32 %v2045, %v1917
      %v2110 = vmul.f32 %v2046, %v1918
      %v2111 = vmul.f32 %v2047, %v1919
      %v2112 = vmul.f32 %v2048, %v1920
      %v2113 = vmul.f32 %v2049, %v1921
      %v2114 = vmul.f32 %v2050, %v1922
      %v2115 = vmul.f32 %v2051, %v1923
      %v2116 = vmul.f32 %v2052, %v1924
      %v2117 = vmul.f32 %v2053, %v1925
      %v2118 = vmul.f32 %v2054, %v1926
      %v2119 = vmul.f32 %v2055, %v1927
      %v2120 = vmul.f32 %v2056, %v1928
      %v2121 = vmul.f32 %v2057, %v1929
      %v2122 = vmul.f32 %v2058, %v1930
      %v2123 = vmul.f32 %v2059, %v1931
      %v2124 = vmul.f32 %v2060, %v1932
      %v2125 = vmul.f32 %v2061, %v1933
      %v2126 = vmul.f32 %v2062, %v1934
      %v2127 = vmul.f32 %v2063, %v1935
      %v2128 = vmul.f32 %v2064, %v1936
      %v2129 = vmul.f32 %v2065, %v1873
      %v2130 = vmul.f32 %v2066, %v1874
      %v2131 = vmul.f32 %v2067, %v1875
      %v2132 = vmul.f32 %v2068, %v1876
      %v2133 = vmul.f32 %v2069, %v1877
      %v2134 = vmul.f32 %v2070, %v1878
      %v2135 = vmul.f32 %v2071, %v1879
      %v2136 = vmul.f32 %v2072, %v1880
      %v2137 = vmul.f32 %v2073, %v1881
      %v2138 = vmul.f32 %v2074, %v1882
      %v2139 = vmul.f32 %v2075, %v1883
      %v2140 = vmul.f32 %v2076, %v1884
      %v2141 = vmul.f32 %v2077, %v1885
      %v2142 = vmul.f32 %v2078, %v1886
      %v2143 = vmul.f32 %v2079, %v1887
      %v2144 = vmul.f32 %v2080, %v1888
      %v2145 = vmul.f32 %v2081, %v1889
      %v2146 = vmul.f32 %v2082, %v1890
      %v2147 = vmul.f32 %v2083, %v1891
      %v2148 = vmul.f32 %v2084, %v1892
      %v2149 = vmul.f32 %v2085, %v1893
      %v2150 = vmul.f32 %v2086, %v1894
      %v2151 = vmul.f32 %v2087, %v1895
      %v2152 = vmul.f32 %v2088, %v1896
      %v2153 = vmul.f32 %v2089, %v1897
      %v2154 = vmul.f32 %v2090, %v1898
      %v2155 = vmul.f32 %v2091, %v1899
      %v2156 = vmul.f32 %v2092, %v1900
      %v2157 = vmul.f32 %v2093, %v1901
      %v2158 = vmul.f32 %v2094, %v1902
      %v2159 = vmul.f32 %v2095, %v1903
      %v2160 = vmul.f32 %v2096, %v1904
      %v2161 = vmul.f32 %v2097, %v1905
      %v2162 = vmul.f32 %v2098, %v1906
      %v2163 = vmul.f32 %v2099, %v1907
      %v2164 = vmul.f32 %v2100, %v1908
      %v2165 = vmul.f32 %v2101, %v1909
      %v2166 = vmul.f32 %v2102, %v1910
      %v2167 = vmul.f32 %v2103, %v1911
      %v2168 = vmul.f32 %v2104, %v1912
      %v2169 = vmul.f32 %v2105, %v1913
      %v2170 = vmul.f32 %v2106, %v1914
      %v2171 = vmul.f32 %v2107, %v1915
      %v2172 = vmul.f32 %v2108, %v1916
      %v2173 = vmul.f32 %v2109, %v1917
      %v2174 = vmul.f32 %v2110, %v1918
      %v2175 = vmul.f32 %v2111, %v1919
      %v2176 = vmul.f32 %v2112, %v1920
      %v2177 = vmul.f32 %v2113, %v1921
      %v2178 = vmul.f32 %v2114, %v1922
      %v2179 = vmul.f32 %v2115, %v1923
      %v2180 = vmul.f32 %v2116, %v1924
      %v2181 = vmul.f32 %v2117, %v1925
      %v2182 = vmul.f32 %v2118, %v1926
      %v2183 = vmul.f32 %v2119, %v1927
      %v2184 = vmul.f32 %v2120, %v1928
      %v2185 = vmul.f32 %v2121, %v1929
      %v2186 = vmul.f32 %v2122, %v1930
      %v2187 = vmul.f32 %v2123, %v1931
      %v2188 = vmul.f32 %v2124, %v1932
      %v2189 = vmul.f32 %v2125, %v1933
      %v2190 = vmul.f32 %v2126, %v1934
      %v2191 = vmul.f32 %v2127, %v1935
      %v2192 = vmul.f32 %v2128, %v1936
      %v2193 = vadd.f32 %v1873, %v2129
      %v2194 = vadd.f32 %v1874, %v2130
      %v2195 = vadd.f32 %v1875, %v2131
      %v2196 = vadd.f32 %v1876, %v2132
      %v2197 = vadd.f32 %v1877, %v2133
      %v2198 = vadd.f32 %v1878, %v2134
      %v2199 = vadd.f32 %v1879, %v2135
      %v2200 = vadd.f32 %v1880, %v2136
      %v2201 = vadd.f32 %v1881, %v2137
      %v2202 = vadd.f32 %v1882, %v2138
      %v2203 = vadd.f32 %v1883, %v2139
      %v2204 = vadd.f32 %v1884, %v2140
      %v2205 = vadd.f32 %v1885, %v2141
      %v2206 = vadd.f32 %v1886, %v2142
      %v2207 = vadd.f32 %v1887, %v2143
      %v2208 = vadd.f32 %v1888, %v2144
      %v2209 = vadd.f32 %v1889, %v2145
      %v2210 = vadd.f32 %v1890, %v2146
      %v2211 = vadd.f32 %v1891, %v2147
      %v2212 = vadd.f32 %v1892, %v2148
      %v2213 = vadd.f32 %v1893, %v2149
      %v2214 = vadd.f32 %v1894, %v2150
      %v2215 = vadd.f32 %v1895, %v2151
      %v2216 = vadd.f32 %v1896, %v2152
      %v2217 = vadd.f32 %v1897, %v2153
      %v2218 = vadd.f32 %v1898, %v2154
      %v2219 = vadd.f32 %v1899, %v2155
      %v2220 = vadd.f32 %v1900, %v2156
      %v2221 = vadd.f32 %v1901, %v2157
      %v2222 = vadd.f32 %v1902, %v2158
      %v2223 = vadd.f32 %v1903, %v2159
      %v2224 = vadd.f32 %v1904, %v2160
      %v2225 = vadd.f32 %v1905, %v2161
      %v2226 = vadd.f32 %v1906, %v2162
      %v2227 = vadd.f32 %v1907, %v2163
      %v2228 = vadd.f32 %v1908, %v2164
      %v2229 = vadd.f32 %v1909, %v2165
      %v2230 = vadd.f32 %v1910, %v2166
      %v2231 = vadd.f32 %v1911, %v2167
      %v2232 = vadd.f32 %v1912, %v2168
      %v2233 = vadd.f32 %v1913, %v2169
      %v2234 = vadd.f32 %v1914, %v2170
      %v2235 = vadd.f32 %v1915, %v2171
      %v2236 = vadd.f32 %v1916, %v2172
      %v2237 = vadd.f32 %v1917, %v2173
      %v2238 = vadd.f32 %v1918, %v2174
      %v2239 = vadd.f32 %v1919, %v2175
      %v2240 = vadd.f32 %v1920, %v2176
      %v2241 = vadd.f32 %v1921, %v2177
      %v2242 = vadd.f32 %v1922, %v2178
      %v2243 = vadd.f32 %v1923, %v2179
      %v2244 = vadd.f32 %v1924, %v2180
      %v2245 = vadd.f32 %v1925, %v2181
      %v2246 = vadd.f32 %v1926, %v2182
      %v2247 = vadd.f32 %v1927, %v2183
      %v2248 = vadd.f32 %v1928, %v2184
      %v2249 = vadd.f32 %v1929, %v2185
      %v2250 = vadd.f32 %v1930, %v2186
      %v2251 = vadd.f32 %v1931, %v2187
      %v2252 = vadd.f32 %v1932, %v2188
      %v2253 = vadd.f32 %v1933, %v2189
      %v2254 = vadd.f32 %v1934, %v2190
      %v2255 = vadd.f32 %v1935, %v2191
      %v2256 = vadd.f32 %v1936, %v2192
      %v2257 = vmul.f32 %v2193, 0.7978846
      %v2258 = vmul.f32 %v2194, 0.7978846
      %v2259 = vmul.f32 %v2195, 0.7978846
      %v2260 = vmul.f32 %v2196, 0.7978846
      %v2261 = vmul.f32 %v2197, 0.7978846
      %v2262 = vmul.f32 %v2198, 0.7978846
      %v2263 = vmul.f32 %v2199, 0.7978846
      %v2264 = vmul.f32 %v2200, 0.7978846
      %v2265 = vmul.f32 %v2201, 0.7978846
      %v2266 = vmul.f32 %v2202, 0.7978846
      %v2267 = vmul.f32 %v2203, 0.7978846
      %v2268 = vmul.f32 %v2204, 0.7978846
      %v2269 = vmul.f32 %v2205, 0.7978846
      %v2270 = vmul.f32 %v2206, 0.7978846
      %v2271 = vmul.f32 %v2207, 0.7978846
      %v2272 = vmul.f32 %v2208, 0.7978846
      %v2273 = vmul.f32 %v2209, 0.7978846
      %v2274 = vmul.f32 %v2210, 0.7978846
      %v2275 = vmul.f32 %v2211, 0.7978846
      %v2276 = vmul.f32 %v2212, 0.7978846
      %v2277 = vmul.f32 %v2213, 0.7978846
      %v2278 = vmul.f32 %v2214, 0.7978846
      %v2279 = vmul.f32 %v2215, 0.7978846
      %v2280 = vmul.f32 %v2216, 0.7978846
      %v2281 = vmul.f32 %v2217, 0.7978846
      %v2282 = vmul.f32 %v2218, 0.7978846
      %v2283 = vmul.f32 %v2219, 0.7978846
      %v2284 = vmul.f32 %v2220, 0.7978846
      %v2285 = vmul.f32 %v2221, 0.7978846
      %v2286 = vmul.f32 %v2222, 0.7978846
      %v2287 = vmul.f32 %v2223, 0.7978846
      %v2288 = vmul.f32 %v2224, 0.7978846
      %v2289 = vmul.f32 %v2225, 0.7978846
      %v2290 = vmul.f32 %v2226, 0.7978846
      %v2291 = vmul.f32 %v2227, 0.7978846
      %v2292 = vmul.f32 %v2228, 0.7978846
      %v2293 = vmul.f32 %v2229, 0.7978846
      %v2294 = vmul.f32 %v2230, 0.7978846
      %v2295 = vmul.f32 %v2231, 0.7978846
      %v2296 = vmul.f32 %v2232, 0.7978846
      %v2297 = vmul.f32 %v2233, 0.7978846
      %v2298 = vmul.f32 %v2234, 0.7978846
      %v2299 = vmul.f32 %v2235, 0.7978846
      %v2300 = vmul.f32 %v2236, 0.7978846
      %v2301 = vmul.f32 %v2237, 0.7978846
      %v2302 = vmul.f32 %v2238, 0.7978846
      %v2303 = vmul.f32 %v2239, 0.7978846
      %v2304 = vmul.f32 %v2240, 0.7978846
      %v2305 = vmul.f32 %v2241, 0.7978846
      %v2306 = vmul.f32 %v2242, 0.7978846
      %v2307 = vmul.f32 %v2243, 0.7978846
      %v2308 = vmul.f32 %v2244, 0.7978846
      %v2309 = vmul.f32 %v2245, 0.7978846
      %v2310 = vmul.f32 %v2246, 0.7978846
      %v2311 = vmul.f32 %v2247, 0.7978846
      %v2312 = vmul.f32 %v2248, 0.7978846
      %v2313 = vmul.f32 %v2249, 0.7978846
      %v2314 = vmul.f32 %v2250, 0.7978846
      %v2315 = vmul.f32 %v2251, 0.7978846
      %v2316 = vmul.f32 %v2252, 0.7978846
      %v2317 = vmul.f32 %v2253, 0.7978846
      %v2318 = vmul.f32 %v2254, 0.7978846
      %v2319 = vmul.f32 %v2255, 0.7978846
      %v2320 = vmul.f32 %v2256, 0.7978846
      %v2321 = vtanh.pop %v2257
      %v2322 = vtanh.pop %v2258
      %v2323 = vtanh.pop %v2259
      %v2324 = vtanh.pop %v2260
      %v2325 = vtanh.pop %v2261
      %v2326 = vtanh.pop %v2262
      %v2327 = vtanh.pop %v2263
      %v2328 = vtanh.pop %v2264
      %v2329 = vtanh.pop %v2265
      %v2330 = vtanh.pop %v2266
      %v2331 = vtanh.pop %v2267
      %v2332 = vtanh.pop %v2268
      %v2333 = vtanh.pop %v2269
      %v2334 = vtanh.pop %v2270
      %v2335 = vtanh.pop %v2271
      %v2336 = vtanh.pop %v2272
      %v2337 = vtanh.pop %v2273
      %v2338 = vtanh.pop %v2274
      %v2339 = vtanh.pop %v2275
      %v2340 = vtanh.pop %v2276
      %v2341 = vtanh.pop %v2277
      %v2342 = vtanh.pop %v2278
      %v2343 = vtanh.pop %v2279
      %v2344 = vtanh.pop %v2280
      %v2345 = vtanh.pop %v2281
      %v2346 = vtanh.pop %v2282
      %v2347 = vtanh.pop %v2283
      %v2348 = vtanh.pop %v2284
      %v2349 = vtanh.pop %v2285
      %v2350 = vtanh.pop %v2286
      %v2351 = vtanh.pop %v2287
      %v2352 = vtanh.pop %v2288
      %v2353 = vtanh.pop %v2289
      %v2354 = vtanh.pop %v2290
      %v2355 = vtanh.pop %v2291
      %v2356 = vtanh.pop %v2292
      %v2357 = vtanh.pop %v2293
      %v2358 = vtanh.pop %v2294
      %v2359 = vtanh.pop %v2295
      %v2360 = vtanh.pop %v2296
      %v2361 = vtanh.pop %v2297
      %v2362 = vtanh.pop %v2298
      %v2363 = vtanh.pop %v2299
      %v2364 = vtanh.pop %v2300
      %v2365 = vtanh.pop %v2301
      %v2366 = vtanh.pop %v2302
      %v2367 = vtanh.pop %v2303
      %v2368 = vtanh.pop %v2304
      %v2369 = vtanh.pop %v2305
      %v2370 = vtanh.pop %v2306
      %v2371 = vtanh.pop %v2307
      %v2372 = vtanh.pop %v2308
      %v2373 = vtanh.pop %v2309
      %v2374 = vtanh.pop %v2310
      %v2375 = vtanh.pop %v2311
      %v2376 = vtanh.pop %v2312
      %v2377 = vtanh.pop %v2313
      %v2378 = vtanh.pop %v2314
      %v2379 = vtanh.pop %v2315
      %v2380 = vtanh.pop %v2316
      %v2381 = vtanh.pop %v2317
      %v2382 = vtanh.pop %v2318
      %v2383 = vtanh.pop %v2319
      %v2384 = vtanh.pop %v2320
      %v2385 = vadd.f32 %v2321, 1.0
      %v2386 = vadd.f32 %v2322, 1.0
      %v2387 = vadd.f32 %v2323, 1.0
      %v2388 = vadd.f32 %v2324, 1.0
      %v2389 = vadd.f32 %v2325, 1.0
      %v2390 = vadd.f32 %v2326, 1.0
      %v2391 = vadd.f32 %v2327, 1.0
      %v2392 = vadd.f32 %v2328, 1.0
      %v2393 = vadd.f32 %v2329, 1.0
      %v2394 = vadd.f32 %v2330, 1.0
      %v2395 = vadd.f32 %v2331, 1.0
      %v2396 = vadd.f32 %v2332, 1.0
      %v2397 = vadd.f32 %v2333, 1.0
      %v2398 = vadd.f32 %v2334, 1.0
      %v2399 = vadd.f32 %v2335, 1.0
      %v2400 = vadd.f32 %v2336, 1.0
      %v2401 = vadd.f32 %v2337, 1.0
      %v2402 = vadd.f32 %v2338, 1.0
      %v2403 = vadd.f32 %v2339, 1.0
      %v2404 = vadd.f32 %v2340, 1.0
      %v2405 = vadd.f32 %v2341, 1.0
      %v2406 = vadd.f32 %v2342, 1.0
      %v2407 = vadd.f32 %v2343, 1.0
      %v2408 = vadd.f32 %v2344, 1.0
      %v2409 = vadd.f32 %v2345, 1.0
      %v2410 = vadd.f32 %v2346, 1.0
      %v2411 = vadd.f32 %v2347, 1.0
      %v2412 = vadd.f32 %v2348, 1.0
      %v2413 = vadd.f32 %v2349, 1.0
      %v2414 = vadd.f32 %v2350, 1.0
      %v2415 = vadd.f32 %v2351, 1.0
      %v2416 = vadd.f32 %v2352, 1.0
      %v2417 = vadd.f32 %v2353, 1.0
      %v2418 = vadd.f32 %v2354, 1.0
      %v2419 = vadd.f32 %v2355, 1.0
      %v2420 = vadd.f32 %v2356, 1.0
      %v2421 = vadd.f32 %v2357, 1.0
      %v2422 = vadd.f32 %v2358, 1.0
      %v2423 = vadd.f32 %v2359, 1.0
      %v2424 = vadd.f32 %v2360, 1.0
      %v2425 = vadd.f32 %v2361, 1.0
      %v2426 = vadd.f32 %v2362, 1.0
      %v2427 = vadd.f32 %v2363, 1.0
      %v2428 = vadd.f32 %v2364, 1.0
      %v2429 = vadd.f32 %v2365, 1.0
      %v2430 = vadd.f32 %v2366, 1.0
      %v2431 = vadd.f32 %v2367, 1.0
      %v2432 = vadd.f32 %v2368, 1.0
      %v2433 = vadd.f32 %v2369, 1.0
      %v2434 = vadd.f32 %v2370, 1.0
      %v2435 = vadd.f32 %v2371, 1.0
      %v2436 = vadd.f32 %v2372, 1.0
      %v2437 = vadd.f32 %v2373, 1.0
      %v2438 = vadd.f32 %v2374, 1.0
      %v2439 = vadd.f32 %v2375, 1.0
      %v2440 = vadd.f32 %v2376, 1.0
      %v2441 = vadd.f32 %v2377, 1.0
      %v2442 = vadd.f32 %v2378, 1.0
      %v2443 = vadd.f32 %v2379, 1.0
      %v2444 = vadd.f32 %v2380, 1.0
      %v2445 = vadd.f32 %v2381, 1.0
      %v2446 = vadd.f32 %v2382, 1.0
      %v2447 = vadd.f32 %v2383, 1.0
      %v2448 = vadd.f32 %v2384, 1.0
      %v2449 = vmul.f32 %v1937, %v2385
      %v2450 = vmul.f32 %v1938, %v2386
      %v2451 = vmul.f32 %v1939, %v2387
      %v2452 = vmul.f32 %v1940, %v2388
      %v2453 = vmul.f32 %v1941, %v2389
      %v2454 = vmul.f32 %v1942, %v2390
      %v2455 = vmul.f32 %v1943, %v2391
      %v2456 = vmul.f32 %v1944, %v2392
      %v2457 = vmul.f32 %v1945, %v2393
      %v2458 = vmul.f32 %v1946, %v2394
      %v2459 = vmul.f32 %v1947, %v2395
      %v2460 = vmul.f32 %v1948, %v2396
      %v2461 = vmul.f32 %v1949, %v2397
      %v2462 = vmul.f32 %v1950, %v2398
      %v2463 = vmul.f32 %v1951, %v2399
      %v2464 = vmul.f32 %v1952, %v2400
      %v2465 = vmul.f32 %v1953, %v2401
      %v2466 = vmul.f32 %v1954, %v2402
      %v2467 = vmul.f32 %v1955, %v2403
      %v2468 = vmul.f32 %v1956, %v2404
      %v2469 = vmul.f32 %v1957, %v2405
      %v2470 = vmul.f32 %v1958, %v2406
      %v2471 = vmul.f32 %v1959, %v2407
      %v2472 = vmul.f32 %v1960, %v2408
      %v2473 = vmul.f32 %v1961, %v2409
      %v2474 = vmul.f32 %v1962, %v2410
      %v2475 = vmul.f32 %v1963, %v2411
      %v2476 = vmul.f32 %v1964, %v2412
      %v2477 = vmul.f32 %v1965, %v2413
      %v2478 = vmul.f32 %v1966, %v2414
      %v2479 = vmul.f32 %v1967, %v2415
      %v2480 = vmul.f32 %v1968, %v2416
      %v2481 = vmul.f32 %v1969, %v2417
      %v2482 = vmul.f32 %v1970, %v2418
      %v2483 = vmul.f32 %v1971, %v2419
      %v2484 = vmul.f32 %v1972, %v2420
      %v2485 = vmul.f32 %v1973, %v2421
      %v2486 = vmul.f32 %v1974, %v2422
      %v2487 = vmul.f32 %v1975, %v2423
      %v2488 = vmul.f32 %v1976, %v2424
      %v2489 = vmul.f32 %v1977, %v2425
      %v2490 = vmul.f32 %v1978, %v2426
      %v2491 = vmul.f32 %v1979, %v2427
      %v2492 = vmul.f32 %v1980, %v2428
      %v2493 = vmul.f32 %v1981, %v2429
      %v2494 = vmul.f32 %v1982, %v2430
      %v2495 = vmul.f32 %v1983, %v2431
      %v2496 = vmul.f32 %v1984, %v2432
      %v2497 = vmul.f32 %v1985, %v2433
      %v2498 = vmul.f32 %v1986, %v2434
      %v2499 = vmul.f32 %v1987, %v2435
      %v2500 = vmul.f32 %v1988, %v2436
      %v2501 = vmul.f32 %v1989, %v2437
      %v2502 = vmul.f32 %v1990, %v2438
      %v2503 = vmul.f32 %v1991, %v2439
      %v2504 = vmul.f32 %v1992, %v2440
      %v2505 = vmul.f32 %v1993, %v2441
      %v2506 = vmul.f32 %v1994, %v2442
      %v2507 = vmul.f32 %v1995, %v2443
      %v2508 = vmul.f32 %v1996, %v2444
      %v2509 = vmul.f32 %v1997, %v2445
      %v2510 = vmul.f32 %v1998, %v2446
      %v2511 = vmul.f32 %v1999, %v2447
      %v2512 = vmul.f32 %v2000, %v2448
      %2513 = vst [vmem:[#allocation9] sm:$0xff] %v2449
      %2514 = vst [vmem:[#allocation9 + $0x8] sm:$0xff] %v2450
      %2515 = vst [vmem:[#allocation9 + $0x10] sm:$0xff] %v2451
      %2516 = vst [vmem:[#allocation9 + $0x18] sm:$0xff] %v2452
      %2517 = vst [vmem:[#allocation9 + $0x20] sm:$0xff] %v2453
      %2518 = vst [vmem:[#allocation9 + $0x28] sm:$0xff] %v2454
      %2519 = vst [vmem:[#allocation9 + $0x30] sm:$0xff] %v2455
      %2520 = vst [vmem:[#allocation9 + $0x38] sm:$0xff] %v2456
      %2521 = vst [vmem:[#allocation9 + $0x40] sm:$0xff] %v2457
      %2522 = vst [vmem:[#allocation9 + $0x48] sm:$0xff] %v2458
      %2523 = vst [vmem:[#allocation9 + $0x50] sm:$0xff] %v2459
      %2524 = vst [vmem:[#allocation9 + $0x58] sm:$0xff] %v2460
      %2525 = vst [vmem:[#allocation9 + $0x60] sm:$0xff] %v2461
      %2526 = vst [vmem:[#allocation9 + $0x68] sm:$0xff] %v2462
      %2527 = vst [vmem:[#allocation9 + $0x70] sm:$0xff] %v2463
      %2528 = vst [vmem:[#allocation9 + $0x78] sm:$0xff] %v2464
      %2529 = vst [vmem:[#allocation9 + $0x80] sm:$0xff] %v2465
      %2530 = vst [vmem:[#allocation9 + $0x88] sm:$0xff] %v2466
      %2531 = vst [vmem:[#allocation9 + $0x90] sm:$0xff] %v2467
      %2532 = vst [vmem:[#allocation9 + $0x98] sm:$0xff] %v2468
      %2533 = vst [vmem:[#allocation9 + $0xa0] sm:$0xff] %v2469
      %2534 = vst [vmem:[#allocation9 + $0xa8] sm:$0xff] %v2470
      %2535 = vst [vmem:[#allocation9 + $0xb0] sm:$0xff] %v2471
      %2536 = vst [vmem:[#allocation9 + $0xb8] sm:$0xff] %v2472
      %2537 = vst [vmem:[#allocation9 + $0xc0] sm:$0xff] %v2473
      %2538 = vst [vmem:[#allocation9 + $0xc8] sm:$0xff] %v2474
      %2539 = vst [vmem:[#allocation9 + $0xd0] sm:$0xff] %v2475
      %2540 = vst [vmem:[#allocation9 + $0xd8] sm:$0xff] %v2476
      %2541 = vst [vmem:[#allocation9 + $0xe0] sm:$0xff] %v2477
      %2542 = vst [vmem:[#allocation9 + $0xe8] sm:$0xff] %v2478
      %2543 = vst [vmem:[#allocation9 + $0xf0] sm:$0xff] %v2479
      %2544 = vst [vmem:[#allocation9 + $0xf8] sm:$0xff] %v2480
      %2545 = vst [vmem:[#allocation9 + $0x100] sm:$0xff] %v2481
      %2546 = vst [vmem:[#allocation9 + $0x108] sm:$0xff] %v2482
      %2547 = vst [vmem:[#allocation9 + $0x110] sm:$0xff] %v2483
      %2548 = vst [vmem:[#allocation9 + $0x118] sm:$0xff] %v2484
      %2549 = vst [vmem:[#allocation9 + $0x120] sm:$0xff] %v2485
      %2550 = vst [vmem:[#allocation9 + $0x128] sm:$0xff] %v2486
      %2551 = vst [vmem:[#allocation9 + $0x130] sm:$0xff] %v2487
      %2552 = vst [vmem:[#allocation9 + $0x138] sm:$0xff] %v2488
      %2553 = vst [vmem:[#allocation9 + $0x140] sm:$0xff] %v2489
      %2554 = vst [vmem:[#allocation9 + $0x148] sm:$0xff] %v2490
      %2555 = vst [vmem:[#allocation9 + $0x150] sm:$0xff] %v2491
      %2556 = vst [vmem:[#allocation9 + $0x158] sm:$0xff] %v2492
      %2557 = vst [vmem:[#allocation9 + $0x160] sm:$0xff] %v2493
      %2558 = vst [vmem:[#allocation9 + $0x168] sm:$0xff] %v2494
      %2559 = vst [vmem:[#allocation9 + $0x170] sm:$0xff] %v2495
      %2560 = vst [vmem:[#allocation9 + $0x178] sm:$0xff] %v2496
      %2561 = vst [vmem:[#allocation9 + $0x180] sm:$0xff] %v2497
      %2562 = vst [vmem:[#allocation9 + $0x188] sm:$0xff] %v2498
      %2563 = vst [vmem:[#allocation9 + $0x190] sm:$0xff] %v2499
      %2564 = vst [vmem:[#allocation9 + $0x198] sm:$0xff] %v2500
      %2565 = vst [vmem:[#allocation9 + $0x1a0] sm:$0xff] %v2501
      %2566 = vst [vmem:[#allocation9 + $0x1a8] sm:$0xff] %v2502
      %2567 = vst [vmem:[#allocation9 + $0x1b0] sm:$0xff] %v2503
      %2568 = vst [vmem:[#allocation9 + $0x1b8] sm:$0xff] %v2504
      %2569 = vst [vmem:[#allocation9 + $0x1c0] sm:$0xff] %v2505
      %2570 = vst [vmem:[#allocation9 + $0x1c8] sm:$0xff] %v2506
      %2571 = vst [vmem:[#allocation9 + $0x1d0] sm:$0xff] %v2507
      %2572 = vst [vmem:[#allocation9 + $0x1d8] sm:$0xff] %v2508
      %2573 = vst [vmem:[#allocation9 + $0x1e0] sm:$0xff] %v2509
      %2574 = vst [vmem:[#allocation9 + $0x1e8] sm:$0xff] %v2510
      %2575 = vst [vmem:[#allocation9 + $0x1f0] sm:$0xff] %v2511
      %2576 = vst [vmem:[#allocation9 + $0x1f8] sm:$0xff] %v2512
    $region33: #{tpu_custom_call.1} parent=1 // pred_fallthru
      _
    // Predicated region
    $region34: #{tpu_custom_call.1} parent=1 // pred_check
      _
    $region35: #{tpu_custom_call.1} parent=1 // pred_check_branch
      %2578 = sbr.rel (0) target = $region37
    $region36: #{tpu_custom_call.1} parent=1 // pred_region
      %2580 = vsyncadd [#allocation5], 0
      %s2581 = sshll.u32 [#allocation9], 4
      %s2582 = int_to_ptr.vmem [resolvable:$true] %s2581
      %s2583 = sshll.u32 %s3, 4
      %s2584 = int_to_ptr.hbm [resolvable:$true] %s2583
      %2589 = dma.vmem_to_hbm [thread:$0]  %s2582, 8192, %s2584, [#allocation5], 256, 256, 16
    $region37: #{tpu_custom_call.1} parent=1 // pred_fallthru
      _
    // Predicated region
    $region38: #{tpu_custom_call.1} parent=1 // pred_check
      _
    $region39: #{tpu_custom_call.1} parent=1 // pred_check_branch
      %2591 = sbr.rel (0) target = $region41
    $region40: #{tpu_custom_call.1} parent=1 // pred_region
      %2593 = dma.done [#allocation5], 8192
    $region41: #{tpu_custom_call.1} parent=1 // pred_fallthru
      _
    %2594 = vsyncpa [#allocation4], 1
    %2595 = vsyncpa [#allocation7], 1
    %2596 = vsyncpa [#allocation5], 1

</llo_original>
